<compile_context>
chip_gen: v5e
topology: v5e:2x2
jax: 0.10.0
libtpu: 0.0.40
codegen_flags: <defaults>
</compile_context>

<pallas_src>
import math

import jax
import jax.numpy as jnp
from jax import lax
from jax.experimental import pallas as pl
from jax.experimental.pallas import tpu as pltpu


NEG_INF = -1e30  # large finite mask value (avoids -inf - -inf = NaN hazards)
_MIB = 1024 * 1024


def _pick_tile(total, target):
    """Largest tile <= target that divides `total`."""
    t = min(target, total)
    while total % t != 0:
        t //= 2
    return t


def _device_defaults():
    """Generation-aware (q_tile, kv_tile, vmem_limit_bytes)."""
    try:
        kind = jax.devices()[0].device_kind.lower()
    except Exception:
        kind = ""
    if "v5" in kind:
        # 197 TF/s MXU: TQ=256 with bf16 K/V is already compute-bound.
        return 256, 256, 64 * _MIB
    if "v7" in kind:
        # Only 64 MiB physical VMEM/core: keep the scoped request well below.
        return 512, 256, 48 * _MIB
    if "v6" in kind:
        # 918 TF/s vs ~1.4 TB/s: need TQ~1024 to reach the MXU roofline.
        return 1024, 256, 96 * _MIB
    return 512, 256, 64 * _MIB


def _weight_spec(block_shape, index_map, single_buffer):
    """BlockSpec for grid-constant operands; single-buffered when supported."""
    if single_buffer:
        return pl.BlockSpec(block_shape, index_map,
                            pipeline_mode=pl.Buffered(1))
    return pl.BlockSpec(block_shape, index_map)


# --------------------------------------------------------------------------
# Kernel 1: fused QKV projection (bf16 MXU, f32 accumulation, q pre-scaled)
# --------------------------------------------------------------------------
def _make_qkv_proj_kernel(scale):
    def kernel(x_ref, wq_ref, wk_ref, wv_ref, bq_ref, bk_ref, bv_ref,
               q_ref, k_ref, v_ref):
        x = x_ref[0].astype(jnp.bfloat16)                        # (TP, C)
        q = jnp.dot(x, wq_ref[...], preferred_element_type=jnp.float32)
        k = jnp.dot(x, wk_ref[...], preferred_element_type=jnp.float32)
        v = jnp.dot(x, wv_ref[...], preferred_element_type=jnp.float32)
        # fold 1/sqrt(HD) into q; emit bf16 (halves HBM writeback + reread).
        q_ref[0] = ((q + bq_ref[0]) * scale).astype(jnp.bfloat16)
        k_ref[0] = (k + bk_ref[0]).astype(jnp.bfloat16)
        v_ref[0] = (v + bv_ref[0]).astype(jnp.bfloat16)
    return kernel


# --------------------------------------------------------------------------
# Kernel 2: flash attention (online softmax) + fused output projection
# --------------------------------------------------------------------------
def _make_flash_attn_kernel(TQ, TK, H, C):
    def kernel(q_ref, k_ref, v_ref, wp_ref, bp_ref, y_ref,
               m_ref, l_ref, acc_ref):
        qi = pl.program_id(1)
        ki = pl.program_id(2)

        @pl.when(ki == 0)
        def _init():
            m_ref[...] = jnp.full(m_ref.shape, NEG_INF, jnp.float32)
            l_ref[...] = jnp.zeros(l_ref.shape, jnp.float32)
            acc_ref[...] = jnp.zeros(acc_ref.shape, jnp.float32)

        q_start = qi * TQ
        k_start = ki * TK
        # Tile intersects the causal (lower-triangular) region at all:
        in_range = k_start <= q_start + TQ - 1
        # Tile crosses the diagonal (needs the element-wise mask):
        crosses_diag = k_start + TK - 1 > q_start

        def tile_update(apply_mask):
            # q/k/v already bf16 -> straight onto the MXU, f32 accumulation.
            s = jnp.einsum('hqd,hkd->hqk', q_ref[0], k_ref[0],
                           preferred_element_type=jnp.float32)   # (H, TQ, TK)
            if apply_mask:
                row = q_start + lax.broadcasted_iota(jnp.int32, (TQ, TK), 0)
                col = k_start + lax.broadcasted_iota(jnp.int32, (TQ, TK), 1)
                s = jnp.where((col <= row)[None, :, :], s, NEG_INF)
            m_prev = m_ref[...]                                  # (H, TQ, 1)
            m_new = jnp.maximum(m_prev, jnp.max(s, axis=-1, keepdims=True))
            alpha = jnp.exp(m_prev - m_new)
            p = jnp.exp(s - m_new)                               # (H, TQ, TK)
            l_ref[...] = alpha * l_ref[...] + jnp.sum(p, axis=-1, keepdims=True)
            pv = jnp.einsum('hqk,hkd->hqd', p.astype(jnp.bfloat16), v_ref[0],
                            preferred_element_type=jnp.float32)  # (H, TQ, HD)
            acc_ref[...] = alpha * acc_ref[...] + pv
            m_ref[...] = m_new

        # Interior (fully unmasked) tiles: no iota/compare/select work.
        @pl.when(jnp.logical_and(in_range, jnp.logical_not(crosses_diag)))
        def _interior():
            tile_update(apply_mask=False)

        # Diagonal-crossing tiles: apply the causal mask.
        @pl.when(jnp.logical_and(in_range, crosses_diag))
        def _diagonal():
            tile_update(apply_mask=True)

        # NOTE: finalize fires on the last kv step even if the compute above
        # was skipped for that step (tile fully above the diagonal); this is
        # correct because m/l/acc carry the accumulated state in scratch.
        @pl.when(ki == pl.num_programs(2) - 1)
        def _finalize():
            # approx reciprocal trades a few softmax-normalization bits for an
            # EUP op; fine at bf16-level tolerances.
            inv_l = pl.reciprocal(l_ref[...], approx=True)       # (H, TQ, 1)
            o = (acc_ref[...] * inv_l).astype(jnp.bfloat16)      # (H, TQ, HD)
            # Fused output projection, accumulated head-by-head into a single
            # (TQ, C) buffer (no (H, TQ, C) intermediate -> no vreg blowup):
            #   y = sum_h o[h] @ wproj[h*HD:(h+1)*HD, :] + b
            y = jnp.zeros((TQ, C), jnp.float32)
            for h in range(H):
                y = y + jnp.dot(o[h], wp_ref[h],
                                preferred_element_type=jnp.float32)
            y_ref[0] = (y + bp_ref[0]).astype(y_ref.dtype)
    return kernel


# --------------------------------------------------------------------------
# Wrapper
# --------------------------------------------------------------------------
def _attention_forward_impl(x, wqkv, bqkv, wproj, bproj, n_head,
                            q_tile, kv_tile, vmem_limit, single_buffer):
    B, T, C = x.shape
    H = n_head
    HD = C // H
    scale = 1.0 / math.sqrt(HD)

    TQ = _pick_tile(T, q_tile)
    TK = _pick_tile(T, kv_tile)
    TP = _pick_tile(T, min(q_tile, 256))   # row tile for the QKV projection

    # HBM-side weight layout (free): per-projection bf16 blocks so kernels
    # never slice the lane axis at sub-128 offsets.
    wq = wqkv[:, 0 * C:1 * C].astype(jnp.bfloat16)
    wk = wqkv[:, 1 * C:2 * C].astype(jnp.bfloat16)
    wv = wqkv[:, 2 * C:3 * C].astype(jnp.bfloat16)
    bq = bqkv[0 * C:1 * C].reshape(1, C)
    bk = bqkv[1 * C:2 * C].reshape(1, C)
    bv = bqkv[2 * C:3 * C].reshape(1, C)
    wproj_h = wproj.reshape(H, HD, C).astype(jnp.bfloat16)
    bproj2 = bproj.reshape(1, C)

    # ---- kernel 1: QKV projection, lane-dense bf16 (B, T, C) outputs ----
    q, k, v = pl.pallas_call(
        _make_qkv_proj_kernel(scale),
        out_shape=(jax.ShapeDtypeStruct((B, T, C), jnp.bfloat16),) * 3,
        grid_spec=pltpu.PrefetchScalarGridSpec(
            num_scalar_prefetch=0,
            grid=(B, T // TP),
            in_specs=[
                pl.BlockSpec((1, TP, C), lambda b, i: (b, i, 0)),
                _weight_spec((C, C), lambda b, i: (0, 0), single_buffer),
                _weight_spec((C, C), lambda b, i: (0, 0), single_buffer),
                _weight_spec((C, C), lambda b, i: (0, 0), single_buffer),
                _weight_spec((1, C), lambda b, i: (0, 0), single_buffer),
                _weight_spec((1, C), lambda b, i: (0, 0), single_buffer),
                _weight_spec((1, C), lambda b, i: (0, 0), single_buffer),
            ],
            out_specs=[
                pl.BlockSpec((1, TP, C), lambda b, i: (b, i, 0)),
                pl.BlockSpec((1, TP, C), lambda b, i: (b, i, 0)),
                pl.BlockSpec((1, TP, C), lambda b, i: (b, i, 0)),
            ]),
        compiler_params=pltpu.CompilerParams(
            dimension_semantics=("parallel", "parallel"),
            vmem_limit_bytes=vmem_limit),
    )(x, wq, wk, wv, bq, bk, bv)

    # Head views (B, H, T, HD). k/v transposes are part of the module's return
    # contract (it returns (k, v) in head layout); they're half the bytes now
    # that q/k/v are bf16.
    # TODO(synk): emit q directly as (B, H, T, HD) from kernel 1 when HD % 128 == 0
    # to elide the q transpose (q is not returned to the caller).
    qh = q.reshape(B, T, H, HD).transpose(0, 2, 1, 3)   # pre-scaled, bf16
    kh = k.reshape(B, T, H, HD).transpose(0, 2, 1, 3)
    vh = v.reshape(B, T, H, HD).transpose(0, 2, 1, 3)

    # Causal clamp for the k/v index maps: once ki passes the diagonal the
    # same (already-resident) block is re-selected, so no new DMA is issued.
    def _kv_index(b, qi, ki):
        last_needed = (qi * TQ + TQ - 1) // TK
        return (b, 0, jnp.minimum(ki, last_needed), 0)

    # ---- kernel 2: flash attention + fused output projection ----
    y = pl.pallas_call(
        _make_flash_attn_kernel(TQ, TK, H, C),
        out_shape=jax.ShapeDtypeStruct((B, T, C), x.dtype),
        grid_spec=pltpu.PrefetchScalarGridSpec(
            num_scalar_prefetch=0,
            grid=(B, T // TQ, T // TK),
            in_specs=[
                pl.BlockSpec((1, H, TQ, HD), lambda b, qi, ki: (b, 0, qi, 0)),
                pl.BlockSpec((1, H, TK, HD), _kv_index),
                pl.BlockSpec((1, H, TK, HD), _kv_index),
                _weight_spec((H, HD, C), lambda b, qi, ki: (0, 0, 0),
                             single_buffer),
                _weight_spec((1, C), lambda b, qi, ki: (0, 0), single_buffer),
            ],
            out_specs=pl.BlockSpec((1, TQ, C), lambda b, qi, ki: (b, qi, 0)),
            scratch_shapes=[
                pltpu.VMEM((H, TQ, 1), jnp.float32),   # running max m
                pltpu.VMEM((H, TQ, 1), jnp.float32),   # running sum l
                pltpu.VMEM((H, TQ, HD), jnp.float32),  # output accumulator
            ]),
        compiler_params=pltpu.CompilerParams(
            # B and q-tile axes are "parallel" -> megacore sharding on v7x.
            dimension_semantics=("parallel", "parallel", "arbitrary"),
            vmem_limit_bytes=vmem_limit),
    )(qh, kh, vh, wproj_h, bproj2)

    return y, (kh, vh)


def attention_forward(x, wqkv, bqkv, wproj, bproj, n_head, prevs=(),
                      q_tile=None, kv_tile=None):
    """Pallas equivalent of Attention.forward (eval mode, dropout=0).

    x:     (B, T, C) float32
    wqkv:  (C, 3C)   bqkv: (3C,)     (pre-transposed: y = x @ W + b)
    wproj: (C, C)    bproj: (C,)
    returns (y, (k, v)) with y (B, T, C), k/v (B, n_head, T, C // n_head)
    """
    del prevs  # TODO(synk): 'reflex' multi-prev cross-attention path not implemented.
    dq_tile, dkv_tile, vmem_limit = _device_defaults()
    q_tile = dq_tile if q_tile is None else q_tile
    kv_tile = dkv_tile if kv_tile is None else kv_tile
    try:
        # Preferred: single-buffer the grid-constant weights (pl.Buffered(1)).
        return _attention_forward_impl(x, wqkv, bqkv, wproj, bproj, n_head,
                                       q_tile, kv_tile, vmem_limit,
                                       single_buffer=True)
    except Exception:
        # pipeline_mode=pl.Buffered(1) unsupported on this JAX/Mosaic version:
        # fall back to the default double-buffered BlockSpecs.
        return _attention_forward_impl(x, wqkv, bqkv, wproj, bproj, n_head,
                                       q_tile, kv_tile, vmem_limit,
                                       single_buffer=False)


# --------------------------------------------------------------------------
# Pure-JAX reference mirroring the PyTorch forward (eval mode)
# --------------------------------------------------------------------------
def reference_forward(x, wqkv, bqkv, wproj, bproj, n_head):
    B, T, C = x.shape
    HD = C // n_head
    qkv = x @ wqkv + bqkv
    q, k, v = jnp.split(qkv, 3, axis=-1)
    q = q.reshape(B, T, n_head, HD).transpose(0, 2, 1, 3)
    k = k.reshape(B, T, n_head, HD).transpose(0, 2, 1, 3)
    v = v.reshape(B, T, n_head, HD).transpose(0, 2, 1, 3)
    scale = 1.0 / math.sqrt(HD)
    s = jnp.einsum('bhqd,bhkd->bhqk', q, k) * scale
    mask = jnp.tril(jnp.ones((T, T), dtype=bool))
    s = jnp.where(mask, s, -jnp.inf)
    p = jax.nn.softmax(s, axis=-1)
    y = jnp.einsum('bhqk,bhkd->bhqd', p, v)
    y = y.transpose(0, 2, 1, 3).reshape(B, T, C)
    y = y @ wproj + bproj
    return y, (k, v)


def _run_case(B, T, C, H, q_tile, kv_tile, seed):
    key = jax.random.PRNGKey(seed)
    kx, k1, k2, k3, k4 = jax.random.split(key, 5)
    x = jax.random.normal(kx, (B, T, C), dtype=jnp.float32)
    bound = 1.0 / math.sqrt(C)
    wqkv = jax.random.uniform(k1, (C, 3 * C), jnp.float32, -bound, bound)
    bqkv = jax.random.uniform(k2, (3 * C,), jnp.float32, -bound, bound)
    wproj = jax.random.uniform(k3, (C, C), jnp.float32, -bound, bound)
    bproj = jax.random.uniform(k4, (C,), jnp.float32, -bound, bound)

    y, (k_out, v_out) = attention_forward(x, wqkv, bqkv, wproj, bproj, H,
                                          q_tile=q_tile, kv_tile=kv_tile)
    jax.block_until_ready((y, k_out, v_out))

    y_ref, (k_ref, v_ref) = reference_forward(x, wqkv, bqkv, wproj, bproj, H)
    # bf16 MXU operands / bf16 k,v cache -> relaxed tolerance vs f32 reference.
    tol = dict(rtol=3e-2, atol=3e-2)
    assert jnp.allclose(y, y_ref, **tol), "y mismatch"
    assert jnp.allclose(k_out, k_ref, **tol), "k mismatch"
    assert jnp.allclose(v_out, v_ref, **tol), "v mismatch"


if __name__ == "__main__":
    # Case 1: single-tile path (T fits in one q/kv tile), device-default tiles.
    _run_case(B=2, T=8, C=32, H=4, q_tile=None, kv_tile=None, seed=0)
    # Case 2: forced small tiles -> multi-tile online softmax, the unmasked
    # interior fast path, the diagonal masked path, and the causal DMA clamp.
    _run_case(B=2, T=32, C=32, H=4, q_tile=16, kv_tile=16, seed=0)
    # Case 3: TQ != TK (q tile spans multiple kv tiles), HD=16.
    _run_case(B=1, T=64, C=64, H=4, q_tile=32, kv_tile=16, seed=1)

    print("KERNEL_OK")
</pallas_src>

<mosaic_0001>
module attributes {stable_mosaic.version = 11 : i64} {
  func.func @kernel(%arg0: i32, %arg1: i32, %arg2: memref<1x8x32xf32, #tpu.memory_space<vmem>>, %arg3: memref<32x32xbf16, #tpu.memory_space<vmem>>, %arg4: memref<32x32xbf16, #tpu.memory_space<vmem>>, %arg5: memref<32x32xbf16, #tpu.memory_space<vmem>>, %arg6: memref<1x32xf32, #tpu.memory_space<vmem>>, %arg7: memref<1x32xf32, #tpu.memory_space<vmem>>, %arg8: memref<1x32xf32, #tpu.memory_space<vmem>>, %arg9: memref<1x8x32xbf16, #tpu.memory_space<vmem>>, %arg10: memref<1x8x32xbf16, #tpu.memory_space<vmem>>, %arg11: memref<1x8x32xbf16, #tpu.memory_space<vmem>>) attributes {dimension_semantics = [#tpu.dimension_semantics<parallel>, #tpu.dimension_semantics<parallel>], iteration_bounds = array<i64: 2, 1>, scalar_prefetch = 0 : i64, scratch_operands = 0 : i64, tpu.core_type = #tpu.core_type<tc>, window_params = [{transform_indices = @transform_0, window_bounds = array<i64: 1, 8, 32>}, {pipeline_mode = #tpu.pipeline_mode<synchronous>, transform_indices = @transform_1, window_bounds = array<i64: 32, 32>}, {pipeline_mode = #tpu.pipeline_mode<synchronous>, transform_indices = @transform_2, window_bounds = array<i64: 32, 32>}, {pipeline_mode = #tpu.pipeline_mode<synchronous>, transform_indices = @transform_3, window_bounds = array<i64: 32, 32>}, {pipeline_mode = #tpu.pipeline_mode<synchronous>, transform_indices = @transform_4, window_bounds = array<i64: 1, 32>}, {pipeline_mode = #tpu.pipeline_mode<synchronous>, transform_indices = @transform_5, window_bounds = array<i64: 1, 32>}, {pipeline_mode = #tpu.pipeline_mode<synchronous>, transform_indices = @transform_6, window_bounds = array<i64: 1, 32>}, {transform_indices = @transform_7, window_bounds = array<i64: 1, 8, 32>}, {transform_indices = @transform_8, window_bounds = array<i64: 1, 8, 32>}, {transform_indices = @transform_9, window_bounds = array<i64: 1, 8, 32>}]} {
    %c0 = arith.constant 0 : index
    %c0_0 = arith.constant 0 : index
    %c0_1 = arith.constant 0 : index
    %0 = vector.load %arg2[%c0, %c0_0, %c0_1] : memref<1x8x32xf32, #tpu.memory_space<vmem>>, vector<1x8x32xf32>
    %1 = vector.shape_cast %0 : vector<1x8x32xf32> to vector<8x32xf32>
    %2 = arith.truncf %1 : vector<8x32xf32> to vector<8x32xbf16>
    %c0_2 = arith.constant 0 : index
    %c0_3 = arith.constant 0 : index
    %3 = vector.load %arg3[%c0_2, %c0_3] : memref<32x32xbf16, #tpu.memory_space<vmem>>, vector<32x32xbf16>
    %cst = arith.constant dense<0.000000e+00> : vector<8x32xf32>
    %4 = tpu.matmul %2, %3, %cst {dimension_numbers = #tpu.dot_dimension_numbers<[1], [0], [0], [1], [0, 0, 1, 1], [], []>} : vector<8x32xbf16>, vector<32x32xbf16>, vector<8x32xf32> -> vector<8x32xf32>
    %c0_4 = arith.constant 0 : index
    %c0_5 = arith.constant 0 : index
    %5 = vector.load %arg4[%c0_4, %c0_5] : memref<32x32xbf16, #tpu.memory_space<vmem>>, vector<32x32xbf16>
    %cst_6 = arith.constant dense<0.000000e+00> : vector<8x32xf32>
    %6 = tpu.matmul %2, %5, %cst_6 {dimension_numbers = #tpu.dot_dimension_numbers<[1], [0], [0], [1], [0, 0, 1, 1], [], []>} : vector<8x32xbf16>, vector<32x32xbf16>, vector<8x32xf32> -> vector<8x32xf32>
    %c0_7 = arith.constant 0 : index
    %c0_8 = arith.constant 0 : index
    %7 = vector.load %arg5[%c0_7, %c0_8] : memref<32x32xbf16, #tpu.memory_space<vmem>>, vector<32x32xbf16>
    %cst_9 = arith.constant dense<0.000000e+00> : vector<8x32xf32>
    %8 = tpu.matmul %2, %7, %cst_9 {dimension_numbers = #tpu.dot_dimension_numbers<[1], [0], [0], [1], [0, 0, 1, 1], [], []>} : vector<8x32xbf16>, vector<32x32xbf16>, vector<8x32xf32> -> vector<8x32xf32>
    %c0_10 = arith.constant 0 : index
    %c0_11 = arith.constant 0 : index
    %9 = vector.load %arg6[%c0_10, %c0_11] : memref<1x32xf32, #tpu.memory_space<vmem>>, vector<1x32xf32>
    %10 = vector.shape_cast %9 : vector<1x32xf32> to vector<32xf32>
    %11 = vector.shape_cast %10 : vector<32xf32> to vector<1x32xf32>
    %12 = vector.broadcast %11 : vector<1x32xf32> to vector<8x32xf32>
    %13 = arith.addf %4, %12 : vector<8x32xf32>
    %cst_12 = arith.constant 0.353553385 : f32
    %14 = vector.broadcast %cst_12 : f32 to vector<8x32xf32>
    %15 = arith.mulf %13, %14 : vector<8x32xf32>
    %16 = arith.truncf %15 : vector<8x32xf32> to vector<8x32xbf16>
    %c0_13 = arith.constant 0 : index
    %c0_14 = arith.constant 0 : index
    %c0_15 = arith.constant 0 : index
    %17 = vector.load %arg9[%c0_13, %c0_14, %c0_15] : memref<1x8x32xbf16, #tpu.memory_space<vmem>>, vector<1x8x32xbf16>
    %18 = vector.shape_cast %17 : vector<1x8x32xbf16> to vector<8x32xbf16>
    %19 = vector.shape_cast %16 : vector<8x32xbf16> to vector<1x8x32xbf16>
    tpu.vector_store %arg9[%c0_13, %c0_14, %c0_15], %19 {strides = array<i32>} : memref<1x8x32xbf16, #tpu.memory_space<vmem>>, vector<1x8x32xbf16>,
    %c0_16 = arith.constant 0 : index
    %c0_17 = arith.constant 0 : index
    %20 = vector.load %arg7[%c0_16, %c0_17] : memref<1x32xf32, #tpu.memory_space<vmem>>, vector<1x32xf32>
    %21 = vector.shape_cast %20 : vector<1x32xf32> to vector<32xf32>
    %22 = vector.shape_cast %21 : vector<32xf32> to vector<1x32xf32>
    %23 = vector.broadcast %22 : vector<1x32xf32> to vector<8x32xf32>
    %24 = arith.addf %6, %23 : vector<8x32xf32>
    %25 = arith.truncf %24 : vector<8x32xf32> to vector<8x32xbf16>
    %c0_18 = arith.constant 0 : index
    %c0_19 = arith.constant 0 : index
    %c0_20 = arith.constant 0 : index
    %26 = vector.load %arg10[%c0_18, %c0_19, %c0_20] : memref<1x8x32xbf16, #tpu.memory_space<vmem>>, vector<1x8x32xbf16>
    %27 = vector.shape_cast %26 : vector<1x8x32xbf16> to vector<8x32xbf16>
    %28 = vector.shape_cast %25 : vector<8x32xbf16> to vector<1x8x32xbf16>
    tpu.vector_store %arg10[%c0_18, %c0_19, %c0_20], %28 {strides = array<i32>} : memref<1x8x32xbf16, #tpu.memory_space<vmem>>, vector<1x8x32xbf16>,
    %c0_21 = arith.constant 0 : index
    %c0_22 = arith.constant 0 : index
    %29 = vector.load %arg8[%c0_21, %c0_22] : memref<1x32xf32, #tpu.memory_space<vmem>>, vector<1x32xf32>
    %30 = vector.shape_cast %29 : vector<1x32xf32> to vector<32xf32>
    %31 = vector.shape_cast %30 : vector<32xf32> to vector<1x32xf32>
    %32 = vector.broadcast %31 : vector<1x32xf32> to vector<8x32xf32>
    %33 = arith.addf %8, %32 : vector<8x32xf32>
    %34 = arith.truncf %33 : vector<8x32xf32> to vector<8x32xbf16>
    %c0_23 = arith.constant 0 : index
    %c0_24 = arith.constant 0 : index
    %c0_25 = arith.constant 0 : index
    %35 = vector.load %arg11[%c0_23, %c0_24, %c0_25] : memref<1x8x32xbf16, #tpu.memory_space<vmem>>, vector<1x8x32xbf16>
    %36 = vector.shape_cast %35 : vector<1x8x32xbf16> to vector<8x32xbf16>
    %37 = vector.shape_cast %34 : vector<8x32xbf16> to vector<1x8x32xbf16>
    tpu.vector_store %arg11[%c0_23, %c0_24, %c0_25], %37 {strides = array<i32>} : memref<1x8x32xbf16, #tpu.memory_space<vmem>>, vector<1x8x32xbf16>,
    return
  }
  func.func @transform_0(%arg0: i32, %arg1: i32) -> (i32, i32, i32) {
    %c0_i32 = arith.constant 0 : i32
    %c0_i32_0 = arith.constant 0 : i32
    return %arg0, %arg1, %c0_i32 : i32, i32, i32
  }
  func.func @transform_1(%arg0: i32, %arg1: i32) -> (i32, i32) {
    %c0_i32 = arith.constant 0 : i32
    %c0_i32_0 = arith.constant 0 : i32
    %c0_i32_1 = arith.constant 0 : i32
    return %c0_i32, %c0_i32_0 : i32, i32
  }
  func.func @transform_2(%arg0: i32, %arg1: i32) -> (i32, i32) {
    %c0_i32 = arith.constant 0 : i32
    %c0_i32_0 = arith.constant 0 : i32
    %c0_i32_1 = arith.constant 0 : i32
    return %c0_i32, %c0_i32_0 : i32, i32
  }
  func.func @transform_3(%arg0: i32, %arg1: i32) -> (i32, i32) {
    %c0_i32 = arith.constant 0 : i32
    %c0_i32_0 = arith.constant 0 : i32
    %c0_i32_1 = arith.constant 0 : i32
    return %c0_i32, %c0_i32_0 : i32, i32
  }
  func.func @transform_4(%arg0: i32, %arg1: i32) -> (i32, i32) {
    %c0_i32 = arith.constant 0 : i32
    %c0_i32_0 = arith.constant 0 : i32
    %c0_i32_1 = arith.constant 0 : i32
    return %c0_i32, %c0_i32_0 : i32, i32
  }
  func.func @transform_5(%arg0: i32, %arg1: i32) -> (i32, i32) {
    %c0_i32 = arith.constant 0 : i32
    %c0_i32_0 = arith.constant 0 : i32
    %c0_i32_1 = arith.constant 0 : i32
    return %c0_i32, %c0_i32_0 : i32, i32
  }
  func.func @transform_6(%arg0: i32, %arg1: i32) -> (i32, i32) {
    %c0_i32 = arith.constant 0 : i32
    %c0_i32_0 = arith.constant 0 : i32
    %c0_i32_1 = arith.constant 0 : i32
    return %c0_i32, %c0_i32_0 : i32, i32
  }
  func.func @transform_7(%arg0: i32, %arg1: i32) -> (i32, i32, i32) {
    %c0_i32 = arith.constant 0 : i32
    %c0_i32_0 = arith.constant 0 : i32
    return %arg0, %arg1, %c0_i32 : i32, i32, i32
  }
  func.func @transform_8(%arg0: i32, %arg1: i32) -> (i32, i32, i32) {
    %c0_i32 = arith.constant 0 : i32
    %c0_i32_0 = arith.constant 0 : i32
    return %arg0, %arg1, %c0_i32 : i32, i32, i32
  }
  func.func @transform_9(%arg0: i32, %arg1: i32) -> (i32, i32, i32) {
    %c0_i32 = arith.constant 0 : i32
    %c0_i32_0 = arith.constant 0 : i32
    return %arg0, %arg1, %c0_i32 : i32, i32, i32
  }
}

module attributes {stable_mosaic.version = 11 : i64} {
  func.func @kernel(%arg0: i32, %arg1: i32, %arg2: memref<1x8x32xf32, #tpu.memory_space<vmem>>, %arg3: memref<32x32xbf16, #tpu.memory_space<vmem>>, %arg4: memref<32x32xbf16, #tpu.memory_space<vmem>>, %arg5: memref<32x32xbf16, #tpu.memory_space<vmem>>, %arg6: memref<1x32xf32, #tpu.memory_space<vmem>>, %arg7: memref<1x32xf32, #tpu.memory_space<vmem>>, %arg8: memref<1x32xf32, #tpu.memory_space<vmem>>, %arg9: memref<1x8x32xbf16, #tpu.memory_space<vmem>>, %arg10: memref<1x8x32xbf16, #tpu.memory_space<vmem>>, %arg11: memref<1x8x32xbf16, #tpu.memory_space<vmem>>) attributes {dimension_semantics = [#tpu.dimension_semantics<parallel>, #tpu.dimension_semantics<parallel>], iteration_bounds = array<i64: 2, 1>, scalar_prefetch = 0 : i64, scratch_operands = 0 : i64, tpu.core_type = #tpu.core_type<tc>, window_params = [{transform_indices = @transform_0, window_bounds = array<i64: 1, 8, 32>}, {pipeline_mode = #tpu.pipeline_mode<synchronous>, transform_indices = @transform_1, window_bounds = array<i64: 32, 32>}, {pipeline_mode = #tpu.pipeline_mode<synchronous>, transform_indices = @transform_2, window_bounds = array<i64: 32, 32>}, {pipeline_mode = #tpu.pipeline_mode<synchronous>, transform_indices = @transform_3, window_bounds = array<i64: 32, 32>}, {pipeline_mode = #tpu.pipeline_mode<synchronous>, transform_indices = @transform_4, window_bounds = array<i64: 1, 32>}, {pipeline_mode = #tpu.pipeline_mode<synchronous>, transform_indices = @transform_5, window_bounds = array<i64: 1, 32>}, {pipeline_mode = #tpu.pipeline_mode<synchronous>, transform_indices = @transform_6, window_bounds = array<i64: 1, 32>}, {transform_indices = @transform_7, window_bounds = array<i64: 1, 8, 32>}, {transform_indices = @transform_8, window_bounds = array<i64: 1, 8, 32>}, {transform_indices = @transform_9, window_bounds = array<i64: 1, 8, 32>}]} {
    %c0 = arith.constant 0 : index
    %c0_0 = arith.constant 0 : index
    %c0_1 = arith.constant 0 : index
    %0 = vector.load %arg2[%c0, %c0_0, %c0_1] : memref<1x8x32xf32, #tpu.memory_space<vmem>>, vector<1x8x32xf32>
    %1 = vector.shape_cast %0 : vector<1x8x32xf32> to vector<8x32xf32>
    %2 = arith.truncf %1 : vector<8x32xf32> to vector<8x32xbf16>
    %c0_2 = arith.constant 0 : index
    %c0_3 = arith.constant 0 : index
    %3 = vector.load %arg3[%c0_2, %c0_3] : memref<32x32xbf16, #tpu.memory_space<vmem>>, vector<32x32xbf16>
    %cst = arith.constant dense<0.000000e+00> : vector<8x32xf32>
    %4 = tpu.matmul %2, %3, %cst {dimension_numbers = #tpu.dot_dimension_numbers<[1], [0], [0], [1], [0, 0, 1, 1], [], []>} : vector<8x32xbf16>, vector<32x32xbf16>, vector<8x32xf32> -> vector<8x32xf32>
    %c0_4 = arith.constant 0 : index
    %c0_5 = arith.constant 0 : index
    %5 = vector.load %arg4[%c0_4, %c0_5] : memref<32x32xbf16, #tpu.memory_space<vmem>>, vector<32x32xbf16>
    %cst_6 = arith.constant dense<0.000000e+00> : vector<8x32xf32>
    %6 = tpu.matmul %2, %5, %cst_6 {dimension_numbers = #tpu.dot_dimension_numbers<[1], [0], [0], [1], [0, 0, 1, 1], [], []>} : vector<8x32xbf16>, vector<32x32xbf16>, vector<8x32xf32> -> vector<8x32xf32>
    %c0_7 = arith.constant 0 : index
    %c0_8 = arith.constant 0 : index
    %7 = vector.load %arg5[%c0_7, %c0_8] : memref<32x32xbf16, #tpu.memory_space<vmem>>, vector<32x32xbf16>
    %cst_9 = arith.constant dense<0.000000e+00> : vector<8x32xf32>
    %8 = tpu.matmul %2, %7, %cst_9 {dimension_numbers = #tpu.dot_dimension_numbers<[1], [0], [0], [1], [0, 0, 1, 1], [], []>} : vector<8x32xbf16>, vector<32x32xbf16>, vector<8x32xf32> -> vector<8x32xf32>
    %c0_10 = arith.constant 0 : index
    %c0_11 = arith.constant 0 : index
    %9 = vector.load %arg6[%c0_10, %c0_11] : memref<1x32xf32, #tpu.memory_space<vmem>>, vector<1x32xf32>
    %10 = vector.shape_cast %9 : vector<1x32xf32> to vector<32xf32>
    %11 = vector.shape_cast %10 : vector<32xf32> to vector<1x32xf32>
    %12 = vector.broadcast %11 : vector<1x32xf32> to vector<8x32xf32>
    %13 = arith.addf %4, %12 : vector<8x32xf32>
    %cst_12 = arith.constant 0.353553385 : f32
    %14 = vector.broadcast %cst_12 : f32 to vector<8x32xf32>
    %15 = arith.mulf %13, %14 : vector<8x32xf32>
    %16 = arith.truncf %15 : vector<8x32xf32> to vector<8x32xbf16>
    %c0_13 = arith.constant 0 : index
    %c0_14 = arith.constant 0 : index
    %c0_15 = arith.constant 0 : index
    %17 = vector.load %arg9[%c0_13, %c0_14, %c0_15] : memref<1x8x32xbf16, #tpu.memory_space<vmem>>, vector<1x8x32xbf16>
    %18 = vector.shape_cast %17 : vector<1x8x32xbf16> to vector<8x32xbf16>
    %19 = vector.shape_cast %16 : vector<8x32xbf16> to vector<1x8x32xbf16>
    tpu.vector_store %arg9[%c0_13, %c0_14, %c0_15], %19 {strides = array<i32>} : memref<1x8x32xbf16, #tpu.memory_space<vmem>>, vector<1x8x32xbf16>,
    %c0_16 = arith.constant 0 : index
    %c0_17 = arith.constant 0 : index
    %20 = vector.load %arg7[%c0_16, %c0_17] : memref<1x32xf32, #tpu.memory_space<vmem>>, vector<1x32xf32>
    %21 = vector.shape_cast %20 : vector<1x32xf32> to vector<32xf32>
    %22 = vector.shape_cast %21 : vector<32xf32> to vector<1x32xf32>
    %23 = vector.broadcast %22 : vector<1x32xf32> to vector<8x32xf32>
    %24 = arith.addf %6, %23 : vector<8x32xf32>
    %25 = arith.truncf %24 : vector<8x32xf32> to vector<8x32xbf16>
    %c0_18 = arith.constant 0 : index
    %c0_19 = arith.constant 0 : index
    %c0_20 = arith.constant 0 : index
    %26 = vector.load %arg10[%c0_18, %c0_19, %c0_20] : memref<1x8x32xbf16, #tpu.memory_space<vmem>>, vector<1x8x32xbf16>
    %27 = vector.shape_cast %26 : vector<1x8x32xbf16> to vector<8x32xbf16>
    %28 = vector.shape_cast %25 : vector<8x32xbf16> to vector<1x8x32xbf16>
    tpu.vector_store %arg10[%c0_18, %c0_19, %c0_20], %28 {strides = array<i32>} : memref<1x8x32xbf16, #tpu.memory_space<vmem>>, vector<1x8x32xbf16>,
    %c0_21 = arith.constant 0 : index
    %c0_22 = arith.constant 0 : index
    %29 = vector.load %arg8[%c0_21, %c0_22] : memref<1x32xf32, #tpu.memory_space<vmem>>, vector<1x32xf32>
    %30 = vector.shape_cast %29 : vector<1x32xf32> to vector<32xf32>
    %31 = vector.shape_cast %30 : vector<32xf32> to vector<1x32xf32>
    %32 = vector.broadcast %31 : vector<1x32xf32> to vector<8x32xf32>
    %33 = arith.addf %8, %32 : vector<8x32xf32>
    %34 = arith.truncf %33 : vector<8x32xf32> to vector<8x32xbf16>
    %c0_23 = arith.constant 0 : index
    %c0_24 = arith.constant 0 : index
    %c0_25 = arith.constant 0 : index
    %35 = vector.load %arg11[%c0_23, %c0_24, %c0_25] : memref<1x8x32xbf16, #tpu.memory_space<vmem>>, vector<1x8x32xbf16>
    %36 = vector.shape_cast %35 : vector<1x8x32xbf16> to vector<8x32xbf16>
    %37 = vector.shape_cast %34 : vector<8x32xbf16> to vector<1x8x32xbf16>
    tpu.vector_store %arg11[%c0_23, %c0_24, %c0_25], %37 {strides = array<i32>} : memref<1x8x32xbf16, #tpu.memory_space<vmem>>, vector<1x8x32xbf16>,
    return
  }
  func.func @transform_0(%arg0: i32, %arg1: i32) -> (i32, i32, i32) {
    %c0_i32 = arith.constant 0 : i32
    %c0_i32_0 = arith.constant 0 : i32
    return %arg0, %arg1, %c0_i32 : i32, i32, i32
  }
  func.func @transform_1(%arg0: i32, %arg1: i32) -> (i32, i32) {
    %c0_i32 = arith.constant 0 : i32
    %c0_i32_0 = arith.constant 0 : i32
    %c0_i32_1 = arith.constant 0 : i32
    return %c0_i32, %c0_i32_0 : i32, i32
  }
  func.func @transform_2(%arg0: i32, %arg1: i32) -> (i32, i32) {
    %c0_i32 = arith.constant 0 : i32
    %c0_i32_0 = arith.constant 0 : i32
    %c0_i32_1 = arith.constant 0 : i32
    return %c0_i32, %c0_i32_0 : i32, i32
  }
  func.func @transform_3(%arg0: i32, %arg1: i32) -> (i32, i32) {
    %c0_i32 = arith.constant 0 : i32
    %c0_i32_0 = arith.constant 0 : i32
    %c0_i32_1 = arith.constant 0 : i32
    return %c0_i32, %c0_i32_0 : i32, i32
  }
  func.func @transform_4(%arg0: i32, %arg1: i32) -> (i32, i32) {
    %c0_i32 = arith.constant 0 : i32
    %c0_i32_0 = arith.constant 0 : i32
    %c0_i32_1 = arith.constant 0 : i32
    return %c0_i32, %c0_i32_0 : i32, i32
  }
  func.func @transform_5(%arg0: i32, %arg1: i32) -> (i32, i32) {
    %c0_i32 = arith.constant 0 : i32
    %c0_i32_0 = arith.constant 0 : i32
    %c0_i32_1 = arith.constant 0 : i32
    return %c0_i32, %c0_i32_0 : i32, i32
  }
  func.func @transform_6(%arg0: i32, %arg1: i32) -> (i32, i32) {
    %c0_i32 = arith.constant 0 : i32
    %c0_i32_0 = arith.constant 0 : i32
    %c0_i32_1 = arith.constant 0 : i32
    return %c0_i32, %c0_i32_0 : i32, i32
  }
  func.func @transform_7(%arg0: i32, %arg1: i32) -> (i32, i32, i32) {
    %c0_i32 = arith.constant 0 : i32
    %c0_i32_0 = arith.constant 0 : i32
    return %arg0, %arg1, %c0_i32 : i32, i32, i32
  }
  func.func @transform_8(%arg0: i32, %arg1: i32) -> (i32, i32, i32) {
    %c0_i32 = arith.constant 0 : i32
    %c0_i32_0 = arith.constant 0 : i32
    return %arg0, %arg1, %c0_i32 : i32, i32, i32
  }
  func.func @transform_9(%arg0: i32, %arg1: i32) -> (i32, i32, i32) {
    %c0_i32 = arith.constant 0 : i32
    %c0_i32_0 = arith.constant 0 : i32
    return %arg0, %arg1, %c0_i32 : i32, i32, i32
  }
}

</mosaic_0001>

<llo_original>
// kernel: tpu_custom_call.1
$region0: #{tpu_custom_call.1}
  #allocation0 [shape = 'u32[]', space=smem, size = 0x4, offset = 0x4, fixed_abs, tag = 'smem constant byte address 0x4 - core index']
  #allocation1 [shape = 'u32[72,128]{1,0:T(1,128)}', space=vmem, size = 0x9000, scoped, tag = 'internal scratch']
  %s0 = inlined_call_operand.hbm [shape: f32[2,8,32], index: 0, kind: input, shape index: {}]
  %s1 = inlined_call_operand.hbm [shape: bf16[32,32], index: 1, kind: input, shape index: {}]
  %s2 = inlined_call_operand.hbm [shape: bf16[32,32], index: 2, kind: input, shape index: {}]
  %s3 = inlined_call_operand.hbm [shape: bf16[32,32], index: 3, kind: input, shape index: {}]
  %s4 = inlined_call_operand.vmem [shape: f32[1,32], index: 4, kind: input, shape index: {}]
  %s5 = inlined_call_operand.vmem [shape: f32[1,32], index: 5, kind: input, shape index: {}]
  %s6 = inlined_call_operand.vmem [shape: f32[1,32], index: 6, kind: input, shape index: {}]
  %s7 = inlined_call_operand.hbm [shape: bf16[2,8,32], index: 7, kind: output, shape index: {0}]
  %s8 = inlined_call_operand.hbm [shape: bf16[2,8,32], index: 8, kind: output, shape index: {1}]
  %s9 = inlined_call_operand.hbm [shape: bf16[2,8,32], index: 9, kind: output, shape index: {2}]
  %10 = xla_tuple %s7, %s8, %s9
  %s11 = sld [smem:[#allocation0]]
  $region93: #{tpu_custom_call.1} parent=0
    _
  %s13 = ssub.s32 1, %s11
  %s14 = scalar_select 0, %s13, %s11
  $region1: #{tpu_custom_call.1} parent=0
    #allocation2 [shape = 'u8[8192]{0}', space=vmem, size = 0x2000, scoped, tag = 'input window, operand 0']
    #allocation3 [shape = 's32[2]{0}', space=sflag, size = 0x8, scoped, tag = 'scoped memory for tpu_custom_call.1']
    #allocation4 [shape = 's32[2]{0}', space=sflag, size = 0x8, scoped, tag = 'scoped memory for tpu_custom_call.1']
    #allocation5 [shape = 'u8[8192]{0}', space=vmem, size = 0x2000, scoped, tag = 'input window, operand 1, single buffered']
    #allocation6 [shape = 's32[1]{0}', space=sflag, size = 0x4, scoped, tag = 'scoped memory for tpu_custom_call.1']
    #allocation7 [shape = 'u8[8192]{0}', space=vmem, size = 0x2000, scoped, tag = 'input window, operand 2, single buffered']
    #allocation8 [shape = 'u8[8192]{0}', space=vmem, size = 0x2000, scoped, tag = 'input window, operand 3, single buffered']
    #allocation9 [shape = 's32[1]{0}', space=sflag, size = 0x4, scoped, tag = 'scoped memory for tpu_custom_call.1']
    #allocation10 [shape = 'u8[4096]{0}', space=vmem, size = 0x1000, scoped, tag = 'output window, operand 0']
    #allocation11 [shape = 'u8[4096]{0}', space=vmem, size = 0x1000, scoped, tag = 'output window, operand 1']
    #allocation12 [shape = 's32[2]{0}', space=sflag, size = 0x8, scoped, tag = 'scoped memory for tpu_custom_call.1']
    #allocation13 [shape = 'u8[4096]{0}', space=vmem, size = 0x1000, scoped, tag = 'output window, operand 2']
    %15 = vsyncpa [#allocation3], 0
    %s16 = scalar_lea.sflag [#allocation3], 1
    %17 = vsyncpa %s16, 0
    %18 = vsyncpa [#allocation6], 0
    %19 = vsyncpa [#allocation9], 0
    %20 = vsyncpa [#allocation4], 0
    %s21 = scalar_lea.sflag [#allocation4], 1
    %22 = vsyncpa %s21, 0
    %23 = vsyncpa [#allocation12], 0
    %s24 = scalar_lea.sflag [#allocation12], 1
    %25 = vsyncpa %s24, 0
    loop: start=0, step=1, limit=4
    $region2: #{tpu_custom_call.1} parent=1 // loop_pre_header
      _
    $region3: #{tpu_custom_call.1} parent=1 // loop_header
      %s27 = sphi 0, %s31
      %p28 = scmp.ge.s32.totalorder %s27, 4
      %s34 = sphi 0, %s46
      %s35 = sphi 0, %s42
      %s36 = sphi 0, %s34
      %s37 = sphi 0, %s35
      %s38 = sphi 0, %s36
      %s39 = sphi 0, %s37
      %s51 = sphi 0, %s53
      %s54 = sphi 0, %s51
      %s55 = sphi 0, %s54
      %s71 = sphi 0, %s55
      %s75 = sphi 0, %s75
      %s77 = sphi 0, %s75
      %s78 = sphi 0, %s77
      %s92 = sphi 0, %s78
      %s96 = sphi 0, %s96
      %s98 = sphi 0, %s96
      %s99 = sphi 0, %s98
      %s113 = sphi 0, %s99
      %s117 = sphi 0, %s117
      %s119 = sphi 0, %s117
      %s120 = sphi 0, %s119
      %s134 = sphi 0, %s120
      %s138 = sphi 0, %s138
      %s140 = sphi 0, %s138
      %s141 = sphi 0, %s140
      %s155 = sphi 0, %s141
      %s159 = sphi 0, %s159
      %s161 = sphi 0, %s159
      %s162 = sphi 0, %s161
      %s176 = sphi 0, %s162
      %s180 = sphi 0, %s180
      %s182 = sphi 0, %s180
      %s183 = sphi 0, %s182
      %s197 = sphi 0, %s183
      %s205 = sphi 0, %s207
      %s208 = sphi 0, %s205
      %s209 = sphi 0, %s208
      %s225 = sphi 0, %s209
      %s233 = sphi 0, %s235
      %s236 = sphi 0, %s233
      %s237 = sphi 0, %s236
      %s253 = sphi 0, %s237
      %s261 = sphi 0, %s263
      %s264 = sphi 0, %s261
      %s265 = sphi 0, %s264
      %s281 = sphi 0, %s265
    $region4: #{tpu_custom_call.1} parent=1 // loop_header_branch
      %30 = sbr.rel (%p28) target = $region8
    $region5: #{tpu_custom_call.1} parent=1 // loop_body
      %s32 = ssub.s32 %s27, 1
      %s33 = ssub.s32 %s27, 2
      %s40 = sadd.s32 1, %s35
      %p41 = scmp.ge.s32.totalorder %s40, 1
      %s42 = scalar_select %p41, 0, %s40
      %s43 = sadd.s32 1, %s34
      %s44 = scalar_select %p41, %s43, %s34
      %p45 = scmp.ge.s32.totalorder %s44, 2
      %s46 = scalar_select %p45, 0, %s44
      %s47 = ssub.s32 %s34, %s46
      %s48 = ssub.s32 %s35, %s42
      %s49 = sor.u32 %s47, %s48
      %p50 = scmp.eq.s32.totalorder %s49, 0
      %s52 = sadd.s32 %s51, 1
      %s53 = scalar_select %p50, %s51, %s52
      %p56 = pneg %p50
      %p57 = scmp.eq.s32.totalorder %s27, 1
      %p58 = por %p56, %p57
      %p59 = scmp.ne.s32.totalorder %s51, %s54
      %p60 = scmp.eq.s32.totalorder %s27, 0
      %p61 = por %p59, %p60
      %p62 = scmp.ne.s32.totalorder %s51, %s54
      %p63 = scmp.eq.s32.totalorder %s32, 1
      %p64 = por %p62, %p63
      %p65 = scmp.ne.s32.totalorder %s54, %s55
      %p66 = scmp.eq.s32.totalorder %s32, 0
      %p67 = por %p65, %p66
      %p68 = scmp.ne.s32.totalorder %s54, %s55
      %p69 = scmp.eq.s32.totalorder %s33, 1
      %p70 = por %p68, %p69
      %p72 = scmp.ne.s32.totalorder %s55, %s71
      %p73 = scmp.eq.s32.totalorder %s33, 0
      %p74 = por %p72, %p73
      %s76 = sadd.s32 %s75, 1
      %p79 = scmp.eq.s32.totalorder %s27, 1
      %p80 = scmp.ne.s32.totalorder %s75, %s77
      %p81 = scmp.eq.s32.totalorder %s27, 0
      %p82 = por %p80, %p81
      %p83 = scmp.ne.s32.totalorder %s75, %s77
      %p84 = scmp.eq.s32.totalorder %s32, 1
      %p85 = por %p83, %p84
      %p86 = scmp.ne.s32.totalorder %s77, %s78
      %p87 = scmp.eq.s32.totalorder %s32, 0
      %p88 = por %p86, %p87
      %p89 = scmp.ne.s32.totalorder %s77, %s78
      %p90 = scmp.eq.s32.totalorder %s33, 1
      %p91 = por %p89, %p90
      %p93 = scmp.ne.s32.totalorder %s78, %s92
      %p94 = scmp.eq.s32.totalorder %s33, 0
      %p95 = por %p93, %p94
      %s97 = sadd.s32 %s96, 1
      %p100 = scmp.eq.s32.totalorder %s27, 1
      %p101 = scmp.ne.s32.totalorder %s96, %s98
      %p102 = scmp.eq.s32.totalorder %s27, 0
      %p103 = por %p101, %p102
      %p104 = scmp.ne.s32.totalorder %s96, %s98
      %p105 = scmp.eq.s32.totalorder %s32, 1
      %p106 = por %p104, %p105
      %p107 = scmp.ne.s32.totalorder %s98, %s99
      %p108 = scmp.eq.s32.totalorder %s32, 0
      %p109 = por %p107, %p108
      %p110 = scmp.ne.s32.totalorder %s98, %s99
      %p111 = scmp.eq.s32.totalorder %s33, 1
      %p112 = por %p110, %p111
      %p114 = scmp.ne.s32.totalorder %s99, %s113
      %p115 = scmp.eq.s32.totalorder %s33, 0
      %p116 = por %p114, %p115
      %s118 = sadd.s32 %s117, 1
      %p121 = scmp.eq.s32.totalorder %s27, 1
      %p122 = scmp.ne.s32.totalorder %s117, %s119
      %p123 = scmp.eq.s32.totalorder %s27, 0
      %p124 = por %p122, %p123
      %p125 = scmp.ne.s32.totalorder %s117, %s119
      %p126 = scmp.eq.s32.totalorder %s32, 1
      %p127 = por %p125, %p126
      %p128 = scmp.ne.s32.totalorder %s119, %s120
      %p129 = scmp.eq.s32.totalorder %s32, 0
      %p130 = por %p128, %p129
      %p131 = scmp.ne.s32.totalorder %s119, %s120
      %p132 = scmp.eq.s32.totalorder %s33, 1
      %p133 = por %p131, %p132
      %p135 = scmp.ne.s32.totalorder %s120, %s134
      %p136 = scmp.eq.s32.totalorder %s33, 0
      %p137 = por %p135, %p136
      %s139 = sadd.s32 %s138, 1
      %p142 = scmp.eq.s32.totalorder %s27, 1
      %p143 = scmp.ne.s32.totalorder %s138, %s140
      %p144 = scmp.eq.s32.totalorder %s27, 0
      %p145 = por %p143, %p144
      %p146 = scmp.ne.s32.totalorder %s138, %s140
      %p147 = scmp.eq.s32.totalorder %s32, 1
      %p148 = por %p146, %p147
      %p149 = scmp.ne.s32.totalorder %s140, %s141
      %p150 = scmp.eq.s32.totalorder %s32, 0
      %p151 = por %p149, %p150
      %p152 = scmp.ne.s32.totalorder %s140, %s141
      %p153 = scmp.eq.s32.totalorder %s33, 1
      %p154 = por %p152, %p153
      %p156 = scmp.ne.s32.totalorder %s141, %s155
      %p157 = scmp.eq.s32.totalorder %s33, 0
      %p158 = por %p156, %p157
      %s160 = sadd.s32 %s159, 1
      %p163 = scmp.eq.s32.totalorder %s27, 1
      %p164 = scmp.ne.s32.totalorder %s159, %s161
      %p165 = scmp.eq.s32.totalorder %s27, 0
      %p166 = por %p164, %p165
      %p167 = scmp.ne.s32.totalorder %s159, %s161
      %p168 = scmp.eq.s32.totalorder %s32, 1
      %p169 = por %p167, %p168
      %p170 = scmp.ne.s32.totalorder %s161, %s162
      %p171 = scmp.eq.s32.totalorder %s32, 0
      %p172 = por %p170, %p171
      %p173 = scmp.ne.s32.totalorder %s161, %s162
      %p174 = scmp.eq.s32.totalorder %s33, 1
      %p175 = por %p173, %p174
      %p177 = scmp.ne.s32.totalorder %s162, %s176
      %p178 = scmp.eq.s32.totalorder %s33, 0
      %p179 = por %p177, %p178
      %s181 = sadd.s32 %s180, 1
      %p184 = scmp.eq.s32.totalorder %s27, 1
      %p185 = scmp.ne.s32.totalorder %s180, %s182
      %p186 = scmp.eq.s32.totalorder %s27, 0
      %p187 = por %p185, %p186
      %p188 = scmp.ne.s32.totalorder %s180, %s182
      %p189 = scmp.eq.s32.totalorder %s32, 1
      %p190 = por %p188, %p189
      %p191 = scmp.ne.s32.totalorder %s182, %s183
      %p192 = scmp.eq.s32.totalorder %s32, 0
      %p193 = por %p191, %p192
      %p194 = scmp.ne.s32.totalorder %s182, %s183
      %p195 = scmp.eq.s32.totalorder %s33, 1
      %p196 = por %p194, %p195
      %p198 = scmp.ne.s32.totalorder %s183, %s197
      %p199 = scmp.eq.s32.totalorder %s33, 0
      %p200 = por %p198, %p199
      %s201 = ssub.s32 %s34, %s46
      %s202 = ssub.s32 %s35, %s42
      %s203 = sor.u32 %s201, %s202
      %p204 = scmp.eq.s32.totalorder %s203, 0
      %s206 = sadd.s32 %s205, 1
      %s207 = scalar_select %p204, %s205, %s206
      %p210 = pneg %p204
      %p211 = scmp.eq.s32.totalorder %s27, 1
      %p212 = por %p210, %p211
      %p213 = scmp.ne.s32.totalorder %s205, %s208
      %p214 = scmp.eq.s32.totalorder %s27, 0
      %p215 = por %p213, %p214
      %p216 = scmp.ne.s32.totalorder %s205, %s208
      %p217 = scmp.eq.s32.totalorder %s32, 1
      %p218 = por %p216, %p217
      %p219 = scmp.ne.s32.totalorder %s208, %s209
      %p220 = scmp.eq.s32.totalorder %s32, 0
      %p221 = por %p219, %p220
      %p222 = scmp.ne.s32.totalorder %s208, %s209
      %p223 = scmp.eq.s32.totalorder %s33, 1
      %p224 = por %p222, %p223
      %p226 = scmp.ne.s32.totalorder %s209, %s225
      %p227 = scmp.eq.s32.totalorder %s33, 0
      %p228 = por %p226, %p227
      %s229 = ssub.s32 %s34, %s46
      %s230 = ssub.s32 %s35, %s42
      %s231 = sor.u32 %s229, %s230
      %p232 = scmp.eq.s32.totalorder %s231, 0
      %s234 = sadd.s32 %s233, 1
      %s235 = scalar_select %p232, %s233, %s234
      %p238 = pneg %p232
      %p239 = scmp.eq.s32.totalorder %s27, 1
      %p240 = por %p238, %p239
      %p241 = scmp.ne.s32.totalorder %s233, %s236
      %p242 = scmp.eq.s32.totalorder %s27, 0
      %p243 = por %p241, %p242
      %p244 = scmp.ne.s32.totalorder %s233, %s236
      %p245 = scmp.eq.s32.totalorder %s32, 1
      %p246 = por %p244, %p245
      %p247 = scmp.ne.s32.totalorder %s236, %s237
      %p248 = scmp.eq.s32.totalorder %s32, 0
      %p249 = por %p247, %p248
      %p250 = scmp.ne.s32.totalorder %s236, %s237
      %p251 = scmp.eq.s32.totalorder %s33, 1
      %p252 = por %p250, %p251
      %p254 = scmp.ne.s32.totalorder %s237, %s253
      %p255 = scmp.eq.s32.totalorder %s33, 0
      %p256 = por %p254, %p255
      %s257 = ssub.s32 %s34, %s46
      %s258 = ssub.s32 %s35, %s42
      %s259 = sor.u32 %s257, %s258
      %p260 = scmp.eq.s32.totalorder %s259, 0
      %s262 = sadd.s32 %s261, 1
      %s263 = scalar_select %p260, %s261, %s262
      %p266 = pneg %p260
      %p267 = scmp.eq.s32.totalorder %s27, 1
      %p268 = por %p266, %p267
      %p269 = scmp.ne.s32.totalorder %s261, %s264
      %p270 = scmp.eq.s32.totalorder %s27, 0
      %p271 = por %p269, %p270
      %p272 = scmp.ne.s32.totalorder %s261, %s264
      %p273 = scmp.eq.s32.totalorder %s32, 1
      %p274 = por %p272, %p273
      %p275 = scmp.ne.s32.totalorder %s264, %s265
      %p276 = scmp.eq.s32.totalorder %s32, 0
      %p277 = por %p275, %p276
      %p278 = scmp.ne.s32.totalorder %s264, %s265
      %p279 = scmp.eq.s32.totalorder %s33, 1
      %p280 = por %p278, %p279
      %p282 = scmp.ne.s32.totalorder %s265, %s281
      %p283 = scmp.eq.s32.totalorder %s33, 0
      %p284 = por %p282, %p283
      %p285 = scmp.le.s32.totalorder 1, %s27
      %p286 = scmp.lt.s32.totalorder %s27, 3
      %p287 = pnand %p285, %p286
      %p288 = pneg %p287
      // Predicated region
      $region9: #{tpu_custom_call.1} parent=5 // pred_check
        _
      $region10: #{tpu_custom_call.1} parent=5 // pred_check_branch
        %290 = sbr.rel (%p287) target = $region12
      $region11: #{tpu_custom_call.1} parent=5 // pred_region
        %s291 = ssub.s32 %s27, 1
        // Predicated region
        $region13: #{tpu_custom_call.1} parent=11 // pred_check
          %p292 = pneg %p88
        $region14: #{tpu_custom_call.1} parent=11 // pred_check_branch
          %294 = sbr.rel (%p292) target = $region16
        $region15: #{tpu_custom_call.1} parent=11 // pred_region
          %296 = vsyncadd [#allocation6], 0
          %s297 = sshll.u32 %s1, 4
          %s298 = int_to_ptr.hbm [resolvable:$true] %s297
          %s299 = sshll.u32 [#allocation5], 4
          %s300 = int_to_ptr.vmem [resolvable:$true] %s299
          %305 = dma.hbm_to_vmem [thread:$0]  %s298, 256, %s300, [#allocation6], 64, 64, 4
        $region16: #{tpu_custom_call.1} parent=11 // pred_fallthru
          _
        // Predicated region
        $region17: #{tpu_custom_call.1} parent=11 // pred_check
          %p306 = pneg %p109
        $region18: #{tpu_custom_call.1} parent=11 // pred_check_branch
          %308 = sbr.rel (%p306) target = $region20
        $region19: #{tpu_custom_call.1} parent=11 // pred_region
          %310 = vsyncadd [#allocation6], 0
          %s311 = sshll.u32 %s2, 4
          %s312 = int_to_ptr.hbm [resolvable:$true] %s311
          %s313 = sshll.u32 [#allocation7], 4
          %s314 = int_to_ptr.vmem [resolvable:$true] %s313
          %319 = dma.hbm_to_vmem [thread:$0]  %s312, 256, %s314, [#allocation6], 64, 64, 4
        $region20: #{tpu_custom_call.1} parent=11 // pred_fallthru
          _
        // Predicated region
        $region21: #{tpu_custom_call.1} parent=11 // pred_check
          %p320 = pneg %p130
        $region22: #{tpu_custom_call.1} parent=11 // pred_check_branch
          %322 = sbr.rel (%p320) target = $region24
        $region23: #{tpu_custom_call.1} parent=11 // pred_region
          %324 = vsyncadd [#allocation9], 0
          %s325 = sshll.u32 %s3, 4
          %s326 = int_to_ptr.hbm [resolvable:$true] %s325
          %s327 = sshll.u32 [#allocation8], 4
          %s328 = int_to_ptr.vmem [resolvable:$true] %s327
          %333 = dma.hbm_to_vmem [thread:$0]  %s326, 256, %s328, [#allocation9], 64, 64, 4
        $region24: #{tpu_custom_call.1} parent=11 // pred_fallthru
          _
        // Predicated region
        $region25: #{tpu_custom_call.1} parent=11 // pred_check
          %p334 = pneg %p151
        $region26: #{tpu_custom_call.1} parent=11 // pred_check_branch
          %336 = sbr.rel (%p334) target = $region28
        $region27: #{tpu_custom_call.1} parent=11 // pred_region
          _
        $region28: #{tpu_custom_call.1} parent=11 // pred_fallthru
          _
        // Predicated region
        $region29: #{tpu_custom_call.1} parent=11 // pred_check
          %p337 = pneg %p172
        $region30: #{tpu_custom_call.1} parent=11 // pred_check_branch
          %339 = sbr.rel (%p337) target = $region32
        $region31: #{tpu_custom_call.1} parent=11 // pred_region
          _
        $region32: #{tpu_custom_call.1} parent=11 // pred_fallthru
          _
        // Predicated region
        $region33: #{tpu_custom_call.1} parent=11 // pred_check
          %p340 = pneg %p193
        $region34: #{tpu_custom_call.1} parent=11 // pred_check_branch
          %342 = sbr.rel (%p340) target = $region36
        $region35: #{tpu_custom_call.1} parent=11 // pred_region
          _
        $region36: #{tpu_custom_call.1} parent=11 // pred_fallthru
          _
      $region12: #{tpu_custom_call.1} parent=5 // pred_fallthru
        _
      %p343 = scmp.lt.s32.totalorder %s27, 2
      // Predicated region
      $region37: #{tpu_custom_call.1} parent=5 // pred_check
        %p344 = pneg %p343
      $region38: #{tpu_custom_call.1} parent=5 // pred_check_branch
        %346 = sbr.rel (%p344) target = $region40
      $region39: #{tpu_custom_call.1} parent=5 // pred_region
        // Predicated region
        $region41: #{tpu_custom_call.1} parent=39 // pred_check
          %p347 = pneg %p61
        $region42: #{tpu_custom_call.1} parent=39 // pred_check_branch
          %349 = sbr.rel (%p347) target = $region44
        $region43: #{tpu_custom_call.1} parent=39 // pred_region
          %s350 = sand.u32 %s51, 1
          %s351 = scalar_lea.sflag [#allocation3], %s350
          %s352 = sand.u32 %s51, 1
          %s353 = smul.addr %s352, 8
          %s354 = scalar_lea.vmem [#allocation2], %s353
          %356 = vsyncadd %s351, 0
          %s357 = sadd.s32 %s35, %s34
          %s358 = smul.addr %s357, 8
          %s359 = scalar_lea.hbm %s0, %s358
          %s361 = sshll.u32 %s359, 4
          %s362 = int_to_ptr.hbm [resolvable:$true] %s361
          %s363 = sshll.u32 %s354, 4
          %s364 = int_to_ptr.vmem [resolvable:$true] %s363
          %366 = dma.hbm_to_vmem [thread:$0]  %s362, 128, %s364, %s351
        $region44: #{tpu_custom_call.1} parent=39 // pred_fallthru
          _
      $region40: #{tpu_custom_call.1} parent=5 // pred_fallthru
        _
      %p367 = scmp.le.s32.totalorder 1, %s27
      %p368 = scmp.lt.s32.totalorder %s27, 3
      %p369 = pnand %p367, %p368
      %p370 = pneg %p369
      // Predicated region
      $region45: #{tpu_custom_call.1} parent=5 // pred_check
        _
      $region46: #{tpu_custom_call.1} parent=5 // pred_check_branch
        %372 = sbr.rel (%p369) target = $region48
      $region47: #{tpu_custom_call.1} parent=5 // pred_region
        %s373 = ssub.s32 %s27, 1
        %s374 = sand.u32 %s54, 1
        %s375 = scalar_lea.sflag [#allocation3], %s374
        %s376 = sand.u32 %s54, 1
        %s377 = smul.addr %s376, 8
        %s378 = scalar_lea.vmem [#allocation2], %s377
        // Predicated region
        $region49: #{tpu_custom_call.1} parent=47 // pred_check
          %p379 = pneg %p67
        $region50: #{tpu_custom_call.1} parent=47 // pred_check_branch
          %381 = sbr.rel (%p379) target = $region52
        $region51: #{tpu_custom_call.1} parent=47 // pred_region
          %383 = dma.done %s375, 128
        $region52: #{tpu_custom_call.1} parent=47 // pred_fallthru
          _
        // Predicated region
        $region53: #{tpu_custom_call.1} parent=47 // pred_check
          %p384 = pneg %p88
        $region54: #{tpu_custom_call.1} parent=47 // pred_check_branch
          %386 = sbr.rel (%p384) target = $region56
        $region55: #{tpu_custom_call.1} parent=47 // pred_region
          %388 = dma.done [#allocation6], 256
        $region56: #{tpu_custom_call.1} parent=47 // pred_fallthru
          _
        // Predicated region
        $region57: #{tpu_custom_call.1} parent=47 // pred_check
          %p389 = pneg %p109
        $region58: #{tpu_custom_call.1} parent=47 // pred_check_branch
          %391 = sbr.rel (%p389) target = $region60
        $region59: #{tpu_custom_call.1} parent=47 // pred_region
          %393 = dma.done [#allocation6], 256
        $region60: #{tpu_custom_call.1} parent=47 // pred_fallthru
          _
        // Predicated region
        $region61: #{tpu_custom_call.1} parent=47 // pred_check
          %p394 = pneg %p130
        $region62: #{tpu_custom_call.1} parent=47 // pred_check_branch
          %396 = sbr.rel (%p394) target = $region64
        $region63: #{tpu_custom_call.1} parent=47 // pred_region
          %398 = dma.done [#allocation9], 256
        $region64: #{tpu_custom_call.1} parent=47 // pred_fallthru
          _
        %s399 = sand.u32 %s54, 1
        %s400 = scalar_lea.sflag [#allocation3], %s399
        %s401 = sand.u32 %s54, 1
        %s402 = smul.addr %s401, 8
        %s403 = scalar_lea.vmem [#allocation2], %s402
        %p404 = pneg %p67
        %p405 = pneg %p64
        %p406 = pneg %p88
        %p407 = pneg %p85
        %p408 = pneg %p109
        %p409 = pneg %p106
        %p410 = pneg %p130
        %p411 = pneg %p127
        %p412 = pneg %p151
        %p413 = pneg %p148
        %p414 = pneg %p172
        %p415 = pneg %p169
        %p416 = pneg %p193
        %p417 = pneg %p190
        %p418 = pneg %p221
        %p419 = pneg %p218
        %s420 = sand.u32 %s208, 1
        %s421 = scalar_lea.sflag [#allocation4], %s420
        %s422 = sand.u32 %s208, 1
        %s423 = smul.addr %s422, 4
        %s424 = scalar_lea.vmem [#allocation10], %s423
        %p425 = pneg %p249
        %p426 = pneg %p246
        %s427 = sand.u32 %s32, 1
        %s428 = scalar_lea.sflag [#allocation12], %s427
        %s429 = sand.u32 %s236, 1
        %s430 = smul.addr %s429, 4
        %s431 = scalar_lea.vmem [#allocation11], %s430
        %p432 = pneg %p277
        %p433 = pneg %p274
        %s434 = sand.u32 %s32, 1
        %s435 = scalar_lea.sflag [#allocation12], %s434
        %s436 = sand.u32 %s264, 1
        %s437 = smul.addr %s436, 4
        %s438 = scalar_lea.vmem [#allocation13], %s437
        %v440 = vld [vmem:[%s378] sm:$0xff]
        %v441 = vpack.c.bf16 %v440, %v440
        %v442 = vld [vmem:[#allocation5] sm:$0xf]
        %v443 = vld [vmem:[#allocation5 + $0x4] sm:$0xf]
        %v444 = vld [vmem:[#allocation5 + $0x8] sm:$0xf]
        %v445 = vld [vmem:[#allocation5 + $0xc] sm:$0xf]
        %v446 = vld [vmem:[#allocation7] sm:$0xf]
        %v447 = vld [vmem:[#allocation7 + $0x4] sm:$0xf]
        %v448 = vld [vmem:[#allocation7 + $0x8] sm:$0xf]
        %v449 = vld [vmem:[#allocation7 + $0xc] sm:$0xf]
        %v450 = vld [vmem:[#allocation8] sm:$0xf]
        %v451 = vld [vmem:[#allocation8 + $0x4] sm:$0xf]
        %v452 = vld [vmem:[#allocation8 + $0x8] sm:$0xf]
        %v453 = vld [vmem:[#allocation8 + $0xc] sm:$0xf]
        %v454 = vld [vmem:[%s4] sm:$0x1]
        %v456 = vperm.slane %v454, 0
        %v462 = vunpack.c.l.b16 %v442
        %v463 = vunpack.c.l.b16 %v443
        %v464 = vunpack.c.l.b16 %v444
        %v465 = vunpack.c.l.b16 %v445
        %v466 = vpack.c.b16 %v463, %v462
        %v467 = vpack.c.b16 %v465, %v464
        %vm470 = vcmask 261120
        %v472 = vsel %vm470, %v441, 0
        %474 = vmatpush.bf16.msra.mxu0 0
        %475 = vmatpush.bf16.msra.mxu0 0
        %476 = vmatpush.bf16.msra.mxu0 0
        %477 = vmatpush.bf16.msra.mxu0 0
        %478 = vmatpush.bf16.msra.mxu0 0
        %479 = vmatpush.bf16.msra.mxu0 0
        %480 = vmatpush.bf16.msra.mxu0 %v467
        %481 = vmatpush.bf16.msra.mxu0 %v466
        %482 = vmatmul.bf16.gmra.mxu0 %v472
        %v483 = vpop.f32.mrf.mxu0
        %v484 = vadd.f32 %v456, %v483
        %v485 = vpop.f32.mrf.mxu0
        %486 = vdwg.mxu0
        %v487 = vmul.f32 %v484, 0.35355338
        %v488 = vpack.c.bf16 %v487, %v487
        %vm489 = vcmask 257024
        %490 = vst.msk [vmem:[%s424] sm:$0xf] %vm489, %v488
        %v491 = vld [vmem:[%s5] sm:$0x1]
        %v493 = vperm.slane %v491, 0
        %v499 = vunpack.c.l.b16 %v446
        %v500 = vunpack.c.l.b16 %v447
        %v501 = vunpack.c.l.b16 %v448
        %v502 = vunpack.c.l.b16 %v449
        %v503 = vpack.c.b16 %v500, %v499
        %v504 = vpack.c.b16 %v502, %v501
        %507 = vmatpush.bf16.msra.mxu0 0
        %508 = vmatpush.bf16.msra.mxu0 0
        %509 = vmatpush.bf16.msra.mxu0 0
        %510 = vmatpush.bf16.msra.mxu0 0
        %511 = vmatpush.bf16.msra.mxu0 0
        %512 = vmatpush.bf16.msra.mxu0 0
        %513 = vmatpush.bf16.msra.mxu0 %v504
        %514 = vmatpush.bf16.msra.mxu0 %v503
        %515 = vmatmul.bf16.gmra.mxu0 %v472
        %v516 = vpop.f32.mrf.mxu0
        %v517 = vadd.f32 %v493, %v516
        %v518 = vpop.f32.mrf.mxu0
        %519 = vdwg.mxu0
        %v520 = vpack.c.bf16 %v517, %v517
        %521 = vst.msk [vmem:[%s431] sm:$0xf] %vm489, %v520
        %v522 = vld [vmem:[%s6] sm:$0x1]
        %v524 = vperm.slane %v522, 0
        %v530 = vunpack.c.l.b16 %v450
        %v531 = vunpack.c.l.b16 %v451
        %v532 = vunpack.c.l.b16 %v452
        %v533 = vunpack.c.l.b16 %v453
        %v534 = vpack.c.b16 %v531, %v530
        %v535 = vpack.c.b16 %v533, %v532
        %538 = vmatpush.bf16.msra.mxu0 0
        %539 = vmatpush.bf16.msra.mxu0 0
        %540 = vmatpush.bf16.msra.mxu0 0
        %541 = vmatpush.bf16.msra.mxu0 0
        %542 = vmatpush.bf16.msra.mxu0 0
        %543 = vmatpush.bf16.msra.mxu0 0
        %544 = vmatpush.bf16.msra.mxu0 %v535
        %545 = vmatpush.bf16.msra.mxu0 %v534
        %546 = vmatmul.bf16.gmra.mxu0 %v472
        %v547 = vpop.f32.mrf.mxu0
        %v548 = vadd.f32 %v524, %v547
        %v549 = vpop.f32.mrf.mxu0
        %550 = vdwg.mxu0
        %v551 = vpack.c.bf16 %v548, %v548
        %552 = vst.msk [vmem:[%s438] sm:$0xf] %vm489, %v551
        %s553 = sand.u32 %s208, 1
        %s554 = scalar_lea.sflag [#allocation4], %s553
        %s555 = sand.u32 %s208, 1
        %s556 = smul.addr %s555, 4
        %s557 = scalar_lea.vmem [#allocation10], %s556
        %s558 = sand.u32 %s32, 1
        %s559 = scalar_lea.sflag [#allocation12], %s558
        %s560 = sand.u32 %s236, 1
        %s561 = smul.addr %s560, 4
        %s562 = scalar_lea.vmem [#allocation11], %s561
        %s563 = sand.u32 %s32, 1
        %s564 = scalar_lea.sflag [#allocation12], %s563
        %s565 = sand.u32 %s264, 1
        %s566 = smul.addr %s565, 4
        %s567 = scalar_lea.vmem [#allocation13], %s566
        // Predicated region
        $region65: #{tpu_custom_call.1} parent=47 // pred_check
          %p568 = pneg %p218
        $region66: #{tpu_custom_call.1} parent=47 // pred_check_branch
          %570 = sbr.rel (%p568) target = $region68
        $region67: #{tpu_custom_call.1} parent=47 // pred_region
          %572 = vsyncadd %s554, 0
          %s573 = sadd.s32 %s37, %s36
          %s574 = smul.addr %s573, 4
          %s575 = scalar_lea.hbm %s7, %s574
          %s577 = sshll.u32 %s557, 4
          %s578 = int_to_ptr.vmem [resolvable:$true] %s577
          %s579 = sshll.u32 %s575, 4
          %s580 = int_to_ptr.hbm [resolvable:$true] %s579
          %582 = dma.vmem_to_hbm [thread:$0]  %s578, 64, %s580, %s554
        $region68: #{tpu_custom_call.1} parent=47 // pred_fallthru
          _
        // Predicated region
        $region69: #{tpu_custom_call.1} parent=47 // pred_check
          %p583 = pneg %p246
        $region70: #{tpu_custom_call.1} parent=47 // pred_check_branch
          %585 = sbr.rel (%p583) target = $region72
        $region71: #{tpu_custom_call.1} parent=47 // pred_region
          %587 = vsyncadd %s559, 0
          %s588 = sadd.s32 %s37, %s36
          %s589 = smul.addr %s588, 4
          %s590 = scalar_lea.hbm %s8, %s589
          %s592 = sshll.u32 %s562, 4
          %s593 = int_to_ptr.vmem [resolvable:$true] %s592
          %s594 = sshll.u32 %s590, 4
          %s595 = int_to_ptr.hbm [resolvable:$true] %s594
          %597 = dma.vmem_to_hbm [thread:$0]  %s593, 64, %s595, %s559
        $region72: #{tpu_custom_call.1} parent=47 // pred_fallthru
          _
        // Predicated region
        $region73: #{tpu_custom_call.1} parent=47 // pred_check
          %p598 = pneg %p274
        $region74: #{tpu_custom_call.1} parent=47 // pred_check_branch
          %600 = sbr.rel (%p598) target = $region76
        $region75: #{tpu_custom_call.1} parent=47 // pred_region
          %602 = vsyncadd %s564, 0
          %s603 = sadd.s32 %s37, %s36
          %s604 = smul.addr %s603, 4
          %s605 = scalar_lea.hbm %s9, %s604
          %s607 = sshll.u32 %s567, 4
          %s608 = int_to_ptr.vmem [resolvable:$true] %s607
          %s609 = sshll.u32 %s605, 4
          %s610 = int_to_ptr.hbm [resolvable:$true] %s609
          %612 = dma.vmem_to_hbm [thread:$0]  %s608, 64, %s610, %s564
        $region76: #{tpu_custom_call.1} parent=47 // pred_fallthru
          _
      $region48: #{tpu_custom_call.1} parent=5 // pred_fallthru
        _
      %p613 = scmp.le.s32.totalorder 2, %s27
      // Predicated region
      $region77: #{tpu_custom_call.1} parent=5 // pred_check
        %p614 = pneg %p613
      $region78: #{tpu_custom_call.1} parent=5 // pred_check_branch
        %616 = sbr.rel (%p614) target = $region80
      $region79: #{tpu_custom_call.1} parent=5 // pred_region
        %s617 = ssub.s32 %s27, 2
        // Predicated region
        $region81: #{tpu_custom_call.1} parent=79 // pred_check
          %p618 = pneg %p224
        $region82: #{tpu_custom_call.1} parent=79 // pred_check_branch
          %620 = sbr.rel (%p618) target = $region84
        $region83: #{tpu_custom_call.1} parent=79 // pred_region
          %s621 = sand.u32 %s209, 1
          %s622 = scalar_lea.sflag [#allocation4], %s621
          %s623 = sand.u32 %s209, 1
          %s624 = smul.addr %s623, 4
          %s625 = scalar_lea.vmem [#allocation10], %s624
          %627 = dma.done %s622, 64
        $region84: #{tpu_custom_call.1} parent=79 // pred_fallthru
          _
        // Predicated region
        $region85: #{tpu_custom_call.1} parent=79 // pred_check
          %p628 = pneg %p252
        $region86: #{tpu_custom_call.1} parent=79 // pred_check_branch
          %630 = sbr.rel (%p628) target = $region88
        $region87: #{tpu_custom_call.1} parent=79 // pred_region
          %s631 = sand.u32 %s33, 1
          %s632 = scalar_lea.sflag [#allocation12], %s631
          %s633 = sand.u32 %s237, 1
          %s634 = smul.addr %s633, 4
          %s635 = scalar_lea.vmem [#allocation11], %s634
          %637 = dma.done %s632, 64
        $region88: #{tpu_custom_call.1} parent=79 // pred_fallthru
          _
        // Predicated region
        $region89: #{tpu_custom_call.1} parent=79 // pred_check
          %p638 = pneg %p280
        $region90: #{tpu_custom_call.1} parent=79 // pred_check_branch
          %640 = sbr.rel (%p638) target = $region92
        $region91: #{tpu_custom_call.1} parent=79 // pred_region
          %s641 = sand.u32 %s33, 1
          %s642 = scalar_lea.sflag [#allocation12], %s641
          %s643 = sand.u32 %s265, 1
          %s644 = smul.addr %s643, 4
          %s645 = scalar_lea.vmem [#allocation13], %s644
          %647 = dma.done %s642, 64
        $region92: #{tpu_custom_call.1} parent=79 // pred_fallthru
          _
      $region80: #{tpu_custom_call.1} parent=5 // pred_fallthru
        _
    $region6: #{tpu_custom_call.1} parent=1 // loop_footer
      %s31 = sadd.s32 1, %s27
    $region7: #{tpu_custom_call.1} parent=1 // loop_footer_branch
      %26 = sbr.rel target = $region3
    $region8: #{tpu_custom_call.1} parent=1 // loop_exit
      _
    %648 = vsyncpa [#allocation3], 1
    %s649 = scalar_lea.sflag [#allocation3], 1
    %650 = vsyncpa %s649, 1
    %651 = vsyncpa [#allocation6], 1
    %652 = vsyncpa [#allocation9], 1
    %653 = vsyncpa [#allocation4], 1
    %s654 = scalar_lea.sflag [#allocation4], 1
    %655 = vsyncpa %s654, 1
    %656 = vsyncpa [#allocation12], 1
    %s657 = scalar_lea.sflag [#allocation12], 1
    %658 = vsyncpa %s657, 1

// kernel: tpu_custom_call.1
$region0: #{tpu_custom_call.1}
  #allocation0 [shape = 'u32[]', space=smem, size = 0x4, offset = 0x4, fixed_abs, tag = 'smem constant byte address 0x4 - core index']
  #allocation1 [shape = 'u32[72,128]{1,0:T(1,128)}', space=vmem, size = 0x9000, scoped, tag = 'internal scratch']
  %s0 = inlined_call_operand.hbm [shape: f32[2,8,32], index: 0, kind: input, shape index: {}]
  %s1 = inlined_call_operand.hbm [shape: bf16[32,32], index: 1, kind: input, shape index: {}]
  %s2 = inlined_call_operand.hbm [shape: bf16[32,32], index: 2, kind: input, shape index: {}]
  %s3 = inlined_call_operand.hbm [shape: bf16[32,32], index: 3, kind: input, shape index: {}]
  %s4 = inlined_call_operand.vmem [shape: f32[1,32], index: 4, kind: input, shape index: {}]
  %s5 = inlined_call_operand.vmem [shape: f32[1,32], index: 5, kind: input, shape index: {}]
  %s6 = inlined_call_operand.vmem [shape: f32[1,32], index: 6, kind: input, shape index: {}]
  %s7 = inlined_call_operand.hbm [shape: bf16[2,8,32], index: 7, kind: output, shape index: {0}]
  %s8 = inlined_call_operand.hbm [shape: bf16[2,8,32], index: 8, kind: output, shape index: {1}]
  %s9 = inlined_call_operand.hbm [shape: bf16[2,8,32], index: 9, kind: output, shape index: {2}]
  %10 = xla_tuple %s7, %s8, %s9
  %s11 = sld [smem:[#allocation0]]
  $region93: #{tpu_custom_call.1} parent=0
    _
  %s13 = ssub.s32 1, %s11
  %s14 = scalar_select 0, %s13, %s11
  $region1: #{tpu_custom_call.1} parent=0
    #allocation2 [shape = 'u8[8192]{0}', space=vmem, size = 0x2000, scoped, tag = 'input window, operand 0']
    #allocation3 [shape = 's32[2]{0}', space=sflag, size = 0x8, scoped, tag = 'scoped memory for tpu_custom_call.1']
    #allocation4 [shape = 's32[2]{0}', space=sflag, size = 0x8, scoped, tag = 'scoped memory for tpu_custom_call.1']
    #allocation5 [shape = 'u8[8192]{0}', space=vmem, size = 0x2000, scoped, tag = 'input window, operand 1, single buffered']
    #allocation6 [shape = 's32[1]{0}', space=sflag, size = 0x4, scoped, tag = 'scoped memory for tpu_custom_call.1']
    #allocation7 [shape = 'u8[8192]{0}', space=vmem, size = 0x2000, scoped, tag = 'input window, operand 2, single buffered']
    #allocation8 [shape = 'u8[8192]{0}', space=vmem, size = 0x2000, scoped, tag = 'input window, operand 3, single buffered']
    #allocation9 [shape = 's32[1]{0}', space=sflag, size = 0x4, scoped, tag = 'scoped memory for tpu_custom_call.1']
    #allocation10 [shape = 'u8[4096]{0}', space=vmem, size = 0x1000, scoped, tag = 'output window, operand 0']
    #allocation11 [shape = 'u8[4096]{0}', space=vmem, size = 0x1000, scoped, tag = 'output window, operand 1']
    #allocation12 [shape = 's32[2]{0}', space=sflag, size = 0x8, scoped, tag = 'scoped memory for tpu_custom_call.1']
    #allocation13 [shape = 'u8[4096]{0}', space=vmem, size = 0x1000, scoped, tag = 'output window, operand 2']
    %15 = vsyncpa [#allocation3], 0
    %s16 = scalar_lea.sflag [#allocation3], 1
    %17 = vsyncpa %s16, 0
    %18 = vsyncpa [#allocation6], 0
    %19 = vsyncpa [#allocation9], 0
    %20 = vsyncpa [#allocation4], 0
    %s21 = scalar_lea.sflag [#allocation4], 1
    %22 = vsyncpa %s21, 0
    %23 = vsyncpa [#allocation12], 0
    %s24 = scalar_lea.sflag [#allocation12], 1
    %25 = vsyncpa %s24, 0
    loop: start=0, step=1, limit=4
    $region2: #{tpu_custom_call.1} parent=1 // loop_pre_header
      _
    $region3: #{tpu_custom_call.1} parent=1 // loop_header
      %s27 = sphi 0, %s31
      %p28 = scmp.ge.s32.totalorder %s27, 4
      %s34 = sphi 0, %s46
      %s35 = sphi 0, %s42
      %s36 = sphi 0, %s34
      %s37 = sphi 0, %s35
      %s38 = sphi 0, %s36
      %s39 = sphi 0, %s37
      %s51 = sphi 0, %s53
      %s54 = sphi 0, %s51
      %s55 = sphi 0, %s54
      %s71 = sphi 0, %s55
      %s75 = sphi 0, %s75
      %s77 = sphi 0, %s75
      %s78 = sphi 0, %s77
      %s92 = sphi 0, %s78
      %s96 = sphi 0, %s96
      %s98 = sphi 0, %s96
      %s99 = sphi 0, %s98
      %s113 = sphi 0, %s99
      %s117 = sphi 0, %s117
      %s119 = sphi 0, %s117
      %s120 = sphi 0, %s119
      %s134 = sphi 0, %s120
      %s138 = sphi 0, %s138
      %s140 = sphi 0, %s138
      %s141 = sphi 0, %s140
      %s155 = sphi 0, %s141
      %s159 = sphi 0, %s159
      %s161 = sphi 0, %s159
      %s162 = sphi 0, %s161
      %s176 = sphi 0, %s162
      %s180 = sphi 0, %s180
      %s182 = sphi 0, %s180
      %s183 = sphi 0, %s182
      %s197 = sphi 0, %s183
      %s205 = sphi 0, %s207
      %s208 = sphi 0, %s205
      %s209 = sphi 0, %s208
      %s225 = sphi 0, %s209
      %s233 = sphi 0, %s235
      %s236 = sphi 0, %s233
      %s237 = sphi 0, %s236
      %s253 = sphi 0, %s237
      %s261 = sphi 0, %s263
      %s264 = sphi 0, %s261
      %s265 = sphi 0, %s264
      %s281 = sphi 0, %s265
    $region4: #{tpu_custom_call.1} parent=1 // loop_header_branch
      %30 = sbr.rel (%p28) target = $region8
    $region5: #{tpu_custom_call.1} parent=1 // loop_body
      %s32 = ssub.s32 %s27, 1
      %s33 = ssub.s32 %s27, 2
      %s40 = sadd.s32 1, %s35
      %p41 = scmp.ge.s32.totalorder %s40, 1
      %s42 = scalar_select %p41, 0, %s40
      %s43 = sadd.s32 1, %s34
      %s44 = scalar_select %p41, %s43, %s34
      %p45 = scmp.ge.s32.totalorder %s44, 2
      %s46 = scalar_select %p45, 0, %s44
      %s47 = ssub.s32 %s34, %s46
      %s48 = ssub.s32 %s35, %s42
      %s49 = sor.u32 %s47, %s48
      %p50 = scmp.eq.s32.totalorder %s49, 0
      %s52 = sadd.s32 %s51, 1
      %s53 = scalar_select %p50, %s51, %s52
      %p56 = pneg %p50
      %p57 = scmp.eq.s32.totalorder %s27, 1
      %p58 = por %p56, %p57
      %p59 = scmp.ne.s32.totalorder %s51, %s54
      %p60 = scmp.eq.s32.totalorder %s27, 0
      %p61 = por %p59, %p60
      %p62 = scmp.ne.s32.totalorder %s51, %s54
      %p63 = scmp.eq.s32.totalorder %s32, 1
      %p64 = por %p62, %p63
      %p65 = scmp.ne.s32.totalorder %s54, %s55
      %p66 = scmp.eq.s32.totalorder %s32, 0
      %p67 = por %p65, %p66
      %p68 = scmp.ne.s32.totalorder %s54, %s55
      %p69 = scmp.eq.s32.totalorder %s33, 1
      %p70 = por %p68, %p69
      %p72 = scmp.ne.s32.totalorder %s55, %s71
      %p73 = scmp.eq.s32.totalorder %s33, 0
      %p74 = por %p72, %p73
      %s76 = sadd.s32 %s75, 1
      %p79 = scmp.eq.s32.totalorder %s27, 1
      %p80 = scmp.ne.s32.totalorder %s75, %s77
      %p81 = scmp.eq.s32.totalorder %s27, 0
      %p82 = por %p80, %p81
      %p83 = scmp.ne.s32.totalorder %s75, %s77
      %p84 = scmp.eq.s32.totalorder %s32, 1
      %p85 = por %p83, %p84
      %p86 = scmp.ne.s32.totalorder %s77, %s78
      %p87 = scmp.eq.s32.totalorder %s32, 0
      %p88 = por %p86, %p87
      %p89 = scmp.ne.s32.totalorder %s77, %s78
      %p90 = scmp.eq.s32.totalorder %s33, 1
      %p91 = por %p89, %p90
      %p93 = scmp.ne.s32.totalorder %s78, %s92
      %p94 = scmp.eq.s32.totalorder %s33, 0
      %p95 = por %p93, %p94
      %s97 = sadd.s32 %s96, 1
      %p100 = scmp.eq.s32.totalorder %s27, 1
      %p101 = scmp.ne.s32.totalorder %s96, %s98
      %p102 = scmp.eq.s32.totalorder %s27, 0
      %p103 = por %p101, %p102
      %p104 = scmp.ne.s32.totalorder %s96, %s98
      %p105 = scmp.eq.s32.totalorder %s32, 1
      %p106 = por %p104, %p105
      %p107 = scmp.ne.s32.totalorder %s98, %s99
      %p108 = scmp.eq.s32.totalorder %s32, 0
      %p109 = por %p107, %p108
      %p110 = scmp.ne.s32.totalorder %s98, %s99
      %p111 = scmp.eq.s32.totalorder %s33, 1
      %p112 = por %p110, %p111
      %p114 = scmp.ne.s32.totalorder %s99, %s113
      %p115 = scmp.eq.s32.totalorder %s33, 0
      %p116 = por %p114, %p115
      %s118 = sadd.s32 %s117, 1
      %p121 = scmp.eq.s32.totalorder %s27, 1
      %p122 = scmp.ne.s32.totalorder %s117, %s119
      %p123 = scmp.eq.s32.totalorder %s27, 0
      %p124 = por %p122, %p123
      %p125 = scmp.ne.s32.totalorder %s117, %s119
      %p126 = scmp.eq.s32.totalorder %s32, 1
      %p127 = por %p125, %p126
      %p128 = scmp.ne.s32.totalorder %s119, %s120
      %p129 = scmp.eq.s32.totalorder %s32, 0
      %p130 = por %p128, %p129
      %p131 = scmp.ne.s32.totalorder %s119, %s120
      %p132 = scmp.eq.s32.totalorder %s33, 1
      %p133 = por %p131, %p132
      %p135 = scmp.ne.s32.totalorder %s120, %s134
      %p136 = scmp.eq.s32.totalorder %s33, 0
      %p137 = por %p135, %p136
      %s139 = sadd.s32 %s138, 1
      %p142 = scmp.eq.s32.totalorder %s27, 1
      %p143 = scmp.ne.s32.totalorder %s138, %s140
      %p144 = scmp.eq.s32.totalorder %s27, 0
      %p145 = por %p143, %p144
      %p146 = scmp.ne.s32.totalorder %s138, %s140
      %p147 = scmp.eq.s32.totalorder %s32, 1
      %p148 = por %p146, %p147
      %p149 = scmp.ne.s32.totalorder %s140, %s141
      %p150 = scmp.eq.s32.totalorder %s32, 0
      %p151 = por %p149, %p150
      %p152 = scmp.ne.s32.totalorder %s140, %s141
      %p153 = scmp.eq.s32.totalorder %s33, 1
      %p154 = por %p152, %p153
      %p156 = scmp.ne.s32.totalorder %s141, %s155
      %p157 = scmp.eq.s32.totalorder %s33, 0
      %p158 = por %p156, %p157
      %s160 = sadd.s32 %s159, 1
      %p163 = scmp.eq.s32.totalorder %s27, 1
      %p164 = scmp.ne.s32.totalorder %s159, %s161
      %p165 = scmp.eq.s32.totalorder %s27, 0
      %p166 = por %p164, %p165
      %p167 = scmp.ne.s32.totalorder %s159, %s161
      %p168 = scmp.eq.s32.totalorder %s32, 1
      %p169 = por %p167, %p168
      %p170 = scmp.ne.s32.totalorder %s161, %s162
      %p171 = scmp.eq.s32.totalorder %s32, 0
      %p172 = por %p170, %p171
      %p173 = scmp.ne.s32.totalorder %s161, %s162
      %p174 = scmp.eq.s32.totalorder %s33, 1
      %p175 = por %p173, %p174
      %p177 = scmp.ne.s32.totalorder %s162, %s176
      %p178 = scmp.eq.s32.totalorder %s33, 0
      %p179 = por %p177, %p178
      %s181 = sadd.s32 %s180, 1
      %p184 = scmp.eq.s32.totalorder %s27, 1
      %p185 = scmp.ne.s32.totalorder %s180, %s182
      %p186 = scmp.eq.s32.totalorder %s27, 0
      %p187 = por %p185, %p186
      %p188 = scmp.ne.s32.totalorder %s180, %s182
      %p189 = scmp.eq.s32.totalorder %s32, 1
      %p190 = por %p188, %p189
      %p191 = scmp.ne.s32.totalorder %s182, %s183
      %p192 = scmp.eq.s32.totalorder %s32, 0
      %p193 = por %p191, %p192
      %p194 = scmp.ne.s32.totalorder %s182, %s183
      %p195 = scmp.eq.s32.totalorder %s33, 1
      %p196 = por %p194, %p195
      %p198 = scmp.ne.s32.totalorder %s183, %s197
      %p199 = scmp.eq.s32.totalorder %s33, 0
      %p200 = por %p198, %p199
      %s201 = ssub.s32 %s34, %s46
      %s202 = ssub.s32 %s35, %s42
      %s203 = sor.u32 %s201, %s202
      %p204 = scmp.eq.s32.totalorder %s203, 0
      %s206 = sadd.s32 %s205, 1
      %s207 = scalar_select %p204, %s205, %s206
      %p210 = pneg %p204
      %p211 = scmp.eq.s32.totalorder %s27, 1
      %p212 = por %p210, %p211
      %p213 = scmp.ne.s32.totalorder %s205, %s208
      %p214 = scmp.eq.s32.totalorder %s27, 0
      %p215 = por %p213, %p214
      %p216 = scmp.ne.s32.totalorder %s205, %s208
      %p217 = scmp.eq.s32.totalorder %s32, 1
      %p218 = por %p216, %p217
      %p219 = scmp.ne.s32.totalorder %s208, %s209
      %p220 = scmp.eq.s32.totalorder %s32, 0
      %p221 = por %p219, %p220
      %p222 = scmp.ne.s32.totalorder %s208, %s209
      %p223 = scmp.eq.s32.totalorder %s33, 1
      %p224 = por %p222, %p223
      %p226 = scmp.ne.s32.totalorder %s209, %s225
      %p227 = scmp.eq.s32.totalorder %s33, 0
      %p228 = por %p226, %p227
      %s229 = ssub.s32 %s34, %s46
      %s230 = ssub.s32 %s35, %s42
      %s231 = sor.u32 %s229, %s230
      %p232 = scmp.eq.s32.totalorder %s231, 0
      %s234 = sadd.s32 %s233, 1
      %s235 = scalar_select %p232, %s233, %s234
      %p238 = pneg %p232
      %p239 = scmp.eq.s32.totalorder %s27, 1
      %p240 = por %p238, %p239
      %p241 = scmp.ne.s32.totalorder %s233, %s236
      %p242 = scmp.eq.s32.totalorder %s27, 0
      %p243 = por %p241, %p242
      %p244 = scmp.ne.s32.totalorder %s233, %s236
      %p245 = scmp.eq.s32.totalorder %s32, 1
      %p246 = por %p244, %p245
      %p247 = scmp.ne.s32.totalorder %s236, %s237
      %p248 = scmp.eq.s32.totalorder %s32, 0
      %p249 = por %p247, %p248
      %p250 = scmp.ne.s32.totalorder %s236, %s237
      %p251 = scmp.eq.s32.totalorder %s33, 1
      %p252 = por %p250, %p251
      %p254 = scmp.ne.s32.totalorder %s237, %s253
      %p255 = scmp.eq.s32.totalorder %s33, 0
      %p256 = por %p254, %p255
      %s257 = ssub.s32 %s34, %s46
      %s258 = ssub.s32 %s35, %s42
      %s259 = sor.u32 %s257, %s258
      %p260 = scmp.eq.s32.totalorder %s259, 0
      %s262 = sadd.s32 %s261, 1
      %s263 = scalar_select %p260, %s261, %s262
      %p266 = pneg %p260
      %p267 = scmp.eq.s32.totalorder %s27, 1
      %p268 = por %p266, %p267
      %p269 = scmp.ne.s32.totalorder %s261, %s264
      %p270 = scmp.eq.s32.totalorder %s27, 0
      %p271 = por %p269, %p270
      %p272 = scmp.ne.s32.totalorder %s261, %s264
      %p273 = scmp.eq.s32.totalorder %s32, 1
      %p274 = por %p272, %p273
      %p275 = scmp.ne.s32.totalorder %s264, %s265
      %p276 = scmp.eq.s32.totalorder %s32, 0
      %p277 = por %p275, %p276
      %p278 = scmp.ne.s32.totalorder %s264, %s265
      %p279 = scmp.eq.s32.totalorder %s33, 1
      %p280 = por %p278, %p279
      %p282 = scmp.ne.s32.totalorder %s265, %s281
      %p283 = scmp.eq.s32.totalorder %s33, 0
      %p284 = por %p282, %p283
      %p285 = scmp.le.s32.totalorder 1, %s27
      %p286 = scmp.lt.s32.totalorder %s27, 3
      %p287 = pnand %p285, %p286
      %p288 = pneg %p287
      // Predicated region
      $region9: #{tpu_custom_call.1} parent=5 // pred_check
        _
      $region10: #{tpu_custom_call.1} parent=5 // pred_check_branch
        %290 = sbr.rel (%p287) target = $region12
      $region11: #{tpu_custom_call.1} parent=5 // pred_region
        %s291 = ssub.s32 %s27, 1
        // Predicated region
        $region13: #{tpu_custom_call.1} parent=11 // pred_check
          %p292 = pneg %p88
        $region14: #{tpu_custom_call.1} parent=11 // pred_check_branch
          %294 = sbr.rel (%p292) target = $region16
        $region15: #{tpu_custom_call.1} parent=11 // pred_region
          %296 = vsyncadd [#allocation6], 0
          %s297 = sshll.u32 %s1, 4
          %s298 = int_to_ptr.hbm [resolvable:$true] %s297
          %s299 = sshll.u32 [#allocation5], 4
          %s300 = int_to_ptr.vmem [resolvable:$true] %s299
          %305 = dma.hbm_to_vmem [thread:$0]  %s298, 256, %s300, [#allocation6], 64, 64, 4
        $region16: #{tpu_custom_call.1} parent=11 // pred_fallthru
          _
        // Predicated region
        $region17: #{tpu_custom_call.1} parent=11 // pred_check
          %p306 = pneg %p109
        $region18: #{tpu_custom_call.1} parent=11 // pred_check_branch
          %308 = sbr.rel (%p306) target = $region20
        $region19: #{tpu_custom_call.1} parent=11 // pred_region
          %310 = vsyncadd [#allocation6], 0
          %s311 = sshll.u32 %s2, 4
          %s312 = int_to_ptr.hbm [resolvable:$true] %s311
          %s313 = sshll.u32 [#allocation7], 4
          %s314 = int_to_ptr.vmem [resolvable:$true] %s313
          %319 = dma.hbm_to_vmem [thread:$0]  %s312, 256, %s314, [#allocation6], 64, 64, 4
        $region20: #{tpu_custom_call.1} parent=11 // pred_fallthru
          _
        // Predicated region
        $region21: #{tpu_custom_call.1} parent=11 // pred_check
          %p320 = pneg %p130
        $region22: #{tpu_custom_call.1} parent=11 // pred_check_branch
          %322 = sbr.rel (%p320) target = $region24
        $region23: #{tpu_custom_call.1} parent=11 // pred_region
          %324 = vsyncadd [#allocation9], 0
          %s325 = sshll.u32 %s3, 4
          %s326 = int_to_ptr.hbm [resolvable:$true] %s325
          %s327 = sshll.u32 [#allocation8], 4
          %s328 = int_to_ptr.vmem [resolvable:$true] %s327
          %333 = dma.hbm_to_vmem [thread:$0]  %s326, 256, %s328, [#allocation9], 64, 64, 4
        $region24: #{tpu_custom_call.1} parent=11 // pred_fallthru
          _
        // Predicated region
        $region25: #{tpu_custom_call.1} parent=11 // pred_check
          %p334 = pneg %p151
        $region26: #{tpu_custom_call.1} parent=11 // pred_check_branch
          %336 = sbr.rel (%p334) target = $region28
        $region27: #{tpu_custom_call.1} parent=11 // pred_region
          _
        $region28: #{tpu_custom_call.1} parent=11 // pred_fallthru
          _
        // Predicated region
        $region29: #{tpu_custom_call.1} parent=11 // pred_check
          %p337 = pneg %p172
        $region30: #{tpu_custom_call.1} parent=11 // pred_check_branch
          %339 = sbr.rel (%p337) target = $region32
        $region31: #{tpu_custom_call.1} parent=11 // pred_region
          _
        $region32: #{tpu_custom_call.1} parent=11 // pred_fallthru
          _
        // Predicated region
        $region33: #{tpu_custom_call.1} parent=11 // pred_check
          %p340 = pneg %p193
        $region34: #{tpu_custom_call.1} parent=11 // pred_check_branch
          %342 = sbr.rel (%p340) target = $region36
        $region35: #{tpu_custom_call.1} parent=11 // pred_region
          _
        $region36: #{tpu_custom_call.1} parent=11 // pred_fallthru
          _
      $region12: #{tpu_custom_call.1} parent=5 // pred_fallthru
        _
      %p343 = scmp.lt.s32.totalorder %s27, 2
      // Predicated region
      $region37: #{tpu_custom_call.1} parent=5 // pred_check
        %p344 = pneg %p343
      $region38: #{tpu_custom_call.1} parent=5 // pred_check_branch
        %346 = sbr.rel (%p344) target = $region40
      $region39: #{tpu_custom_call.1} parent=5 // pred_region
        // Predicated region
        $region41: #{tpu_custom_call.1} parent=39 // pred_check
          %p347 = pneg %p61
        $region42: #{tpu_custom_call.1} parent=39 // pred_check_branch
          %349 = sbr.rel (%p347) target = $region44
        $region43: #{tpu_custom_call.1} parent=39 // pred_region
          %s350 = sand.u32 %s51, 1
          %s351 = scalar_lea.sflag [#allocation3], %s350
          %s352 = sand.u32 %s51, 1
          %s353 = smul.addr %s352, 8
          %s354 = scalar_lea.vmem [#allocation2], %s353
          %356 = vsyncadd %s351, 0
          %s357 = sadd.s32 %s35, %s34
          %s358 = smul.addr %s357, 8
          %s359 = scalar_lea.hbm %s0, %s358
          %s361 = sshll.u32 %s359, 4
          %s362 = int_to_ptr.hbm [resolvable:$true] %s361
          %s363 = sshll.u32 %s354, 4
          %s364 = int_to_ptr.vmem [resolvable:$true] %s363
          %366 = dma.hbm_to_vmem [thread:$0]  %s362, 128, %s364, %s351
        $region44: #{tpu_custom_call.1} parent=39 // pred_fallthru
          _
      $region40: #{tpu_custom_call.1} parent=5 // pred_fallthru
        _
      %p367 = scmp.le.s32.totalorder 1, %s27
      %p368 = scmp.lt.s32.totalorder %s27, 3
      %p369 = pnand %p367, %p368
      %p370 = pneg %p369
      // Predicated region
      $region45: #{tpu_custom_call.1} parent=5 // pred_check
        _
      $region46: #{tpu_custom_call.1} parent=5 // pred_check_branch
        %372 = sbr.rel (%p369) target = $region48
      $region47: #{tpu_custom_call.1} parent=5 // pred_region
        %s373 = ssub.s32 %s27, 1
        %s374 = sand.u32 %s54, 1
        %s375 = scalar_lea.sflag [#allocation3], %s374
        %s376 = sand.u32 %s54, 1
        %s377 = smul.addr %s376, 8
        %s378 = scalar_lea.vmem [#allocation2], %s377
        // Predicated region
        $region49: #{tpu_custom_call.1} parent=47 // pred_check
          %p379 = pneg %p67
        $region50: #{tpu_custom_call.1} parent=47 // pred_check_branch
          %381 = sbr.rel (%p379) target = $region52
        $region51: #{tpu_custom_call.1} parent=47 // pred_region
          %383 = dma.done %s375, 128
        $region52: #{tpu_custom_call.1} parent=47 // pred_fallthru
          _
        // Predicated region
        $region53: #{tpu_custom_call.1} parent=47 // pred_check
          %p384 = pneg %p88
        $region54: #{tpu_custom_call.1} parent=47 // pred_check_branch
          %386 = sbr.rel (%p384) target = $region56
        $region55: #{tpu_custom_call.1} parent=47 // pred_region
          %388 = dma.done [#allocation6], 256
        $region56: #{tpu_custom_call.1} parent=47 // pred_fallthru
          _
        // Predicated region
        $region57: #{tpu_custom_call.1} parent=47 // pred_check
          %p389 = pneg %p109
        $region58: #{tpu_custom_call.1} parent=47 // pred_check_branch
          %391 = sbr.rel (%p389) target = $region60
        $region59: #{tpu_custom_call.1} parent=47 // pred_region
          %393 = dma.done [#allocation6], 256
        $region60: #{tpu_custom_call.1} parent=47 // pred_fallthru
          _
        // Predicated region
        $region61: #{tpu_custom_call.1} parent=47 // pred_check
          %p394 = pneg %p130
        $region62: #{tpu_custom_call.1} parent=47 // pred_check_branch
          %396 = sbr.rel (%p394) target = $region64
        $region63: #{tpu_custom_call.1} parent=47 // pred_region
          %398 = dma.done [#allocation9], 256
        $region64: #{tpu_custom_call.1} parent=47 // pred_fallthru
          _
        %s399 = sand.u32 %s54, 1
        %s400 = scalar_lea.sflag [#allocation3], %s399
        %s401 = sand.u32 %s54, 1
        %s402 = smul.addr %s401, 8
        %s403 = scalar_lea.vmem [#allocation2], %s402
        %p404 = pneg %p67
        %p405 = pneg %p64
        %p406 = pneg %p88
        %p407 = pneg %p85
        %p408 = pneg %p109
        %p409 = pneg %p106
        %p410 = pneg %p130
        %p411 = pneg %p127
        %p412 = pneg %p151
        %p413 = pneg %p148
        %p414 = pneg %p172
        %p415 = pneg %p169
        %p416 = pneg %p193
        %p417 = pneg %p190
        %p418 = pneg %p221
        %p419 = pneg %p218
        %s420 = sand.u32 %s208, 1
        %s421 = scalar_lea.sflag [#allocation4], %s420
        %s422 = sand.u32 %s208, 1
        %s423 = smul.addr %s422, 4
        %s424 = scalar_lea.vmem [#allocation10], %s423
        %p425 = pneg %p249
        %p426 = pneg %p246
        %s427 = sand.u32 %s32, 1
        %s428 = scalar_lea.sflag [#allocation12], %s427
        %s429 = sand.u32 %s236, 1
        %s430 = smul.addr %s429, 4
        %s431 = scalar_lea.vmem [#allocation11], %s430
        %p432 = pneg %p277
        %p433 = pneg %p274
        %s434 = sand.u32 %s32, 1
        %s435 = scalar_lea.sflag [#allocation12], %s434
        %s436 = sand.u32 %s264, 1
        %s437 = smul.addr %s436, 4
        %s438 = scalar_lea.vmem [#allocation13], %s437
        %v440 = vld [vmem:[%s378] sm:$0xff]
        %v441 = vpack.c.bf16 %v440, %v440
        %v442 = vld [vmem:[#allocation5] sm:$0xf]
        %v443 = vld [vmem:[#allocation5 + $0x4] sm:$0xf]
        %v444 = vld [vmem:[#allocation5 + $0x8] sm:$0xf]
        %v445 = vld [vmem:[#allocation5 + $0xc] sm:$0xf]
        %v446 = vld [vmem:[#allocation7] sm:$0xf]
        %v447 = vld [vmem:[#allocation7 + $0x4] sm:$0xf]
        %v448 = vld [vmem:[#allocation7 + $0x8] sm:$0xf]
        %v449 = vld [vmem:[#allocation7 + $0xc] sm:$0xf]
        %v450 = vld [vmem:[#allocation8] sm:$0xf]
        %v451 = vld [vmem:[#allocation8 + $0x4] sm:$0xf]
        %v452 = vld [vmem:[#allocation8 + $0x8] sm:$0xf]
        %v453 = vld [vmem:[#allocation8 + $0xc] sm:$0xf]
        %v454 = vld [vmem:[%s4] sm:$0x1]
        %v456 = vperm.slane %v454, 0
        %v462 = vunpack.c.l.b16 %v442
        %v463 = vunpack.c.l.b16 %v443
        %v464 = vunpack.c.l.b16 %v444
        %v465 = vunpack.c.l.b16 %v445
        %v466 = vpack.c.b16 %v463, %v462
        %v467 = vpack.c.b16 %v465, %v464
        %vm470 = vcmask 261120
        %v472 = vsel %vm470, %v441, 0
        %474 = vmatpush.bf16.msra.mxu0 0
        %475 = vmatpush.bf16.msra.mxu0 0
        %476 = vmatpush.bf16.msra.mxu0 0
        %477 = vmatpush.bf16.msra.mxu0 0
        %478 = vmatpush.bf16.msra.mxu0 0
        %479 = vmatpush.bf16.msra.mxu0 0
        %480 = vmatpush.bf16.msra.mxu0 %v467
        %481 = vmatpush.bf16.msra.mxu0 %v466
        %482 = vmatmul.bf16.gmra.mxu0 %v472
        %v483 = vpop.f32.mrf.mxu0
        %v484 = vadd.f32 %v456, %v483
        %v485 = vpop.f32.mrf.mxu0
        %486 = vdwg.mxu0
        %v487 = vmul.f32 %v484, 0.35355338
        %v488 = vpack.c.bf16 %v487, %v487
        %vm489 = vcmask 257024
        %490 = vst.msk [vmem:[%s424] sm:$0xf] %vm489, %v488
        %v491 = vld [vmem:[%s5] sm:$0x1]
        %v493 = vperm.slane %v491, 0
        %v499 = vunpack.c.l.b16 %v446
        %v500 = vunpack.c.l.b16 %v447
        %v501 = vunpack.c.l.b16 %v448
        %v502 = vunpack.c.l.b16 %v449
        %v503 = vpack.c.b16 %v500, %v499
        %v504 = vpack.c.b16 %v502, %v501
        %507 = vmatpush.bf16.msra.mxu0 0
        %508 = vmatpush.bf16.msra.mxu0 0
        %509 = vmatpush.bf16.msra.mxu0 0
        %510 = vmatpush.bf16.msra.mxu0 0
        %511 = vmatpush.bf16.msra.mxu0 0
        %512 = vmatpush.bf16.msra.mxu0 0
        %513 = vmatpush.bf16.msra.mxu0 %v504
        %514 = vmatpush.bf16.msra.mxu0 %v503
        %515 = vmatmul.bf16.gmra.mxu0 %v472
        %v516 = vpop.f32.mrf.mxu0
        %v517 = vadd.f32 %v493, %v516
        %v518 = vpop.f32.mrf.mxu0
        %519 = vdwg.mxu0
        %v520 = vpack.c.bf16 %v517, %v517
        %521 = vst.msk [vmem:[%s431] sm:$0xf] %vm489, %v520
        %v522 = vld [vmem:[%s6] sm:$0x1]
        %v524 = vperm.slane %v522, 0
        %v530 = vunpack.c.l.b16 %v450
        %v531 = vunpack.c.l.b16 %v451
        %v532 = vunpack.c.l.b16 %v452
        %v533 = vunpack.c.l.b16 %v453
        %v534 = vpack.c.b16 %v531, %v530
        %v535 = vpack.c.b16 %v533, %v532
        %538 = vmatpush.bf16.msra.mxu0 0
        %539 = vmatpush.bf16.msra.mxu0 0
        %540 = vmatpush.bf16.msra.mxu0 0
        %541 = vmatpush.bf16.msra.mxu0 0
        %542 = vmatpush.bf16.msra.mxu0 0
        %543 = vmatpush.bf16.msra.mxu0 0
        %544 = vmatpush.bf16.msra.mxu0 %v535
        %545 = vmatpush.bf16.msra.mxu0 %v534
        %546 = vmatmul.bf16.gmra.mxu0 %v472
        %v547 = vpop.f32.mrf.mxu0
        %v548 = vadd.f32 %v524, %v547
        %v549 = vpop.f32.mrf.mxu0
        %550 = vdwg.mxu0
        %v551 = vpack.c.bf16 %v548, %v548
        %552 = vst.msk [vmem:[%s438] sm:$0xf] %vm489, %v551
        %s553 = sand.u32 %s208, 1
        %s554 = scalar_lea.sflag [#allocation4], %s553
        %s555 = sand.u32 %s208, 1
        %s556 = smul.addr %s555, 4
        %s557 = scalar_lea.vmem [#allocation10], %s556
        %s558 = sand.u32 %s32, 1
        %s559 = scalar_lea.sflag [#allocation12], %s558
        %s560 = sand.u32 %s236, 1
        %s561 = smul.addr %s560, 4
        %s562 = scalar_lea.vmem [#allocation11], %s561
        %s563 = sand.u32 %s32, 1
        %s564 = scalar_lea.sflag [#allocation12], %s563
        %s565 = sand.u32 %s264, 1
        %s566 = smul.addr %s565, 4
        %s567 = scalar_lea.vmem [#allocation13], %s566
        // Predicated region
        $region65: #{tpu_custom_call.1} parent=47 // pred_check
          %p568 = pneg %p218
        $region66: #{tpu_custom_call.1} parent=47 // pred_check_branch
          %570 = sbr.rel (%p568) target = $region68
        $region67: #{tpu_custom_call.1} parent=47 // pred_region
          %572 = vsyncadd %s554, 0
          %s573 = sadd.s32 %s37, %s36
          %s574 = smul.addr %s573, 4
          %s575 = scalar_lea.hbm %s7, %s574
          %s577 = sshll.u32 %s557, 4
          %s578 = int_to_ptr.vmem [resolvable:$true] %s577
          %s579 = sshll.u32 %s575, 4
          %s580 = int_to_ptr.hbm [resolvable:$true] %s579
          %582 = dma.vmem_to_hbm [thread:$0]  %s578, 64, %s580, %s554
        $region68: #{tpu_custom_call.1} parent=47 // pred_fallthru
          _
        // Predicated region
        $region69: #{tpu_custom_call.1} parent=47 // pred_check
          %p583 = pneg %p246
        $region70: #{tpu_custom_call.1} parent=47 // pred_check_branch
          %585 = sbr.rel (%p583) target = $region72
        $region71: #{tpu_custom_call.1} parent=47 // pred_region
          %587 = vsyncadd %s559, 0
          %s588 = sadd.s32 %s37, %s36
          %s589 = smul.addr %s588, 4
          %s590 = scalar_lea.hbm %s8, %s589
          %s592 = sshll.u32 %s562, 4
          %s593 = int_to_ptr.vmem [resolvable:$true] %s592
          %s594 = sshll.u32 %s590, 4
          %s595 = int_to_ptr.hbm [resolvable:$true] %s594
          %597 = dma.vmem_to_hbm [thread:$0]  %s593, 64, %s595, %s559
        $region72: #{tpu_custom_call.1} parent=47 // pred_fallthru
          _
        // Predicated region
        $region73: #{tpu_custom_call.1} parent=47 // pred_check
          %p598 = pneg %p274
        $region74: #{tpu_custom_call.1} parent=47 // pred_check_branch
          %600 = sbr.rel (%p598) target = $region76
        $region75: #{tpu_custom_call.1} parent=47 // pred_region
          %602 = vsyncadd %s564, 0
          %s603 = sadd.s32 %s37, %s36
          %s604 = smul.addr %s603, 4
          %s605 = scalar_lea.hbm %s9, %s604
          %s607 = sshll.u32 %s567, 4
          %s608 = int_to_ptr.vmem [resolvable:$true] %s607
          %s609 = sshll.u32 %s605, 4
          %s610 = int_to_ptr.hbm [resolvable:$true] %s609
          %612 = dma.vmem_to_hbm [thread:$0]  %s608, 64, %s610, %s564
        $region76: #{tpu_custom_call.1} parent=47 // pred_fallthru
          _
      $region48: #{tpu_custom_call.1} parent=5 // pred_fallthru
        _
      %p613 = scmp.le.s32.totalorder 2, %s27
      // Predicated region
      $region77: #{tpu_custom_call.1} parent=5 // pred_check
        %p614 = pneg %p613
      $region78: #{tpu_custom_call.1} parent=5 // pred_check_branch
        %616 = sbr.rel (%p614) target = $region80
      $region79: #{tpu_custom_call.1} parent=5 // pred_region
        %s617 = ssub.s32 %s27, 2
        // Predicated region
        $region81: #{tpu_custom_call.1} parent=79 // pred_check
          %p618 = pneg %p224
        $region82: #{tpu_custom_call.1} parent=79 // pred_check_branch
          %620 = sbr.rel (%p618) target = $region84
        $region83: #{tpu_custom_call.1} parent=79 // pred_region
          %s621 = sand.u32 %s209, 1
          %s622 = scalar_lea.sflag [#allocation4], %s621
          %s623 = sand.u32 %s209, 1
          %s624 = smul.addr %s623, 4
          %s625 = scalar_lea.vmem [#allocation10], %s624
          %627 = dma.done %s622, 64
        $region84: #{tpu_custom_call.1} parent=79 // pred_fallthru
          _
        // Predicated region
        $region85: #{tpu_custom_call.1} parent=79 // pred_check
          %p628 = pneg %p252
        $region86: #{tpu_custom_call.1} parent=79 // pred_check_branch
          %630 = sbr.rel (%p628) target = $region88
        $region87: #{tpu_custom_call.1} parent=79 // pred_region
          %s631 = sand.u32 %s33, 1
          %s632 = scalar_lea.sflag [#allocation12], %s631
          %s633 = sand.u32 %s237, 1
          %s634 = smul.addr %s633, 4
          %s635 = scalar_lea.vmem [#allocation11], %s634
          %637 = dma.done %s632, 64
        $region88: #{tpu_custom_call.1} parent=79 // pred_fallthru
          _
        // Predicated region
        $region89: #{tpu_custom_call.1} parent=79 // pred_check
          %p638 = pneg %p280
        $region90: #{tpu_custom_call.1} parent=79 // pred_check_branch
          %640 = sbr.rel (%p638) target = $region92
        $region91: #{tpu_custom_call.1} parent=79 // pred_region
          %s641 = sand.u32 %s33, 1
          %s642 = scalar_lea.sflag [#allocation12], %s641
          %s643 = sand.u32 %s265, 1
          %s644 = smul.addr %s643, 4
          %s645 = scalar_lea.vmem [#allocation13], %s644
          %647 = dma.done %s642, 64
        $region92: #{tpu_custom_call.1} parent=79 // pred_fallthru
          _
      $region80: #{tpu_custom_call.1} parent=5 // pred_fallthru
        _
    $region6: #{tpu_custom_call.1} parent=1 // loop_footer
      %s31 = sadd.s32 1, %s27
    $region7: #{tpu_custom_call.1} parent=1 // loop_footer_branch
      %26 = sbr.rel target = $region3
    $region8: #{tpu_custom_call.1} parent=1 // loop_exit
      _
    %648 = vsyncpa [#allocation3], 1
    %s649 = scalar_lea.sflag [#allocation3], 1
    %650 = vsyncpa %s649, 1
    %651 = vsyncpa [#allocation6], 1
    %652 = vsyncpa [#allocation9], 1
    %653 = vsyncpa [#allocation4], 1
    %s654 = scalar_lea.sflag [#allocation4], 1
    %655 = vsyncpa %s654, 1
    %656 = vsyncpa [#allocation12], 1
    %s657 = scalar_lea.sflag [#allocation12], 1
    %658 = vsyncpa %s657, 1

</llo_original>
